<compile_context>
chip_gen: v5e
topology: v5e:2x2
jax: 0.10.0
libtpu: 0.0.40
codegen_flags: <defaults>
</compile_context>

<pallas_src>
import functools

import jax
import jax.numpy as jnp
from jax import lax
from jax.experimental import pallas as pl
from jax.experimental.pallas import tpu as pltpu


def _cdiv(a, b):
    return -(-a // b)


# ---------------------------------------------------------------------------
# Pallas kernel: rec tile = A_tile @ B_tile^T (contraction on dim_pred) plus a
# fused, megacore-safe masked squared-error partial per tile.
# ---------------------------------------------------------------------------
def _tile_body(a_ref, b_ref, cpi_ref, mask_ref, rec_ref, ploss_ref,
               *, tm, tn, n_c, n_p):
    i = pl.program_id(0)
    j = pl.program_id(1)

    # A / B are fully VMEM-resident (constant index_map); slice this tile's
    # rows in-kernel.  Starts are tile-aligned -> hint the compiler.
    if a_ref.shape[0] == tm:
        a = a_ref[...]
    else:
        a = a_ref[pl.ds(pl.multiple_of(i * tm, tm), tm), :]
    if b_ref.shape[0] == tn:
        b = b_ref[...]
    else:
        b = b_ref[pl.ds(pl.multiple_of(j * tn, tn), tn), :]

    # rec = A @ B^T as a contraction on dim_pred -> no explicit transpose.
    rec = lax.dot_general(a, b, dimension_numbers=(((1,), (1,)), ((), ())),
                          preferred_element_type=jnp.float32)
    if rec_ref is not None:
        rec_ref[...] = rec

    m = mask_ref[...]
    diff = rec - cpi_ref[...]
    if jnp.issubdtype(mask_ref.dtype, jnp.floating):
        d = m.astype(jnp.float32) * diff          # exact torch semantics
    else:
        d = jnp.where(m != 0, diff, 0.0)          # binary int8/bool mask

    # Ragged-edge masking: only emitted when tiles overhang the real shape.
    if n_c % tm:
        rows = i * tm + lax.broadcasted_iota(jnp.int32, (tm, tn), 0)
        d = jnp.where(rows < n_c, d, 0.0)
    if n_p % tn:
        cols = j * tn + lax.broadcasted_iota(jnp.int32, (tm, tn), 1)
        d = jnp.where(cols < n_p, d, 0.0)

    ploss_ref[...] = jnp.sum(d * d).reshape(1, 1, 1, 1)


def _rec_loss_kernel(a_ref, b_ref, cpi_ref, mask_ref, rec_ref, ploss_ref, **kw):
    _tile_body(a_ref, b_ref, cpi_ref, mask_ref, rec_ref, ploss_ref, **kw)


def _loss_only_kernel(a_ref, b_ref, cpi_ref, mask_ref, ploss_ref, **kw):
    _tile_body(a_ref, b_ref, cpi_ref, mask_ref, None, ploss_ref, **kw)


# ---------------------------------------------------------------------------
# Stage 1 (plain XLA): projections -> LeakyReLU -> normalize -> IMC factors.
# Negligible FLOPs; left to XLA per perf review.
# ---------------------------------------------------------------------------
def _compute_factors(params, compound_embedding, protein_embedding):
    H = params["W_kc"].shape[1]
    # entity = concat([x, x], dim=1)  =>  [x, x] @ W == x @ (W[:H] + W[H:]).
    w_fc_sum = params["W_fc"][:H] + params["W_fc"][H:]
    w_fp_sum = params["W_fp"][:H] + params["W_fp"][H:]

    compound = compound_embedding @ params["W_kc"] + params["b_kc"]
    protein = protein_embedding @ params["W_kp"] + params["b_kp"]

    fc = compound @ w_fc_sum + params["b_fc"]
    fp = protein @ w_fp_sum + params["b_fp"]

    # LeakyReLU (negative_slope = 0.01)
    fc = jnp.where(fc >= 0, fc, 0.01 * fc)
    fp = jnp.where(fp >= 0, fp, 0.01 * fp)

    # F.normalize: x / max(||x||, 1e-12) == x * rsqrt(max(||x||^2, 1e-24))
    fc = fc * lax.rsqrt(jnp.maximum(jnp.sum(fc * fc, axis=1, keepdims=True), 1e-24))
    fp = fp * lax.rsqrt(jnp.maximum(jnp.sum(fp * fp, axis=1, keepdims=True), 1e-24))

    a = fc @ params["W0p"]   # (n_compound, dim_pred)
    b = fp @ params["W1p"]   # (n_protein, dim_pred)
    return a, b


def pna_imc_forward(params, compound_embedding, protein_embedding, cpi, mask,
                    *, tile_m=512, tile_n=1024, compute_rec=True):
    n_c, n_p = cpi.shape
    K = params["W0p"].shape[1]

    a, b = _compute_factors(params, compound_embedding, protein_embedding)

    # --- tile sizes: lane-dense on the protein axis, 32-aligned rows (int8) ---
    tm = n_c if n_c <= tile_m else max(32, (tile_m // 32) * 32)
    tn = n_p if n_p <= tile_n else max(128, (tile_n // 128) * 128)
    gi, gj = _cdiv(n_c, tm), _cdiv(n_p, tn)
    n_c_pad, n_p_pad = gi * tm, gj * tn

    # Only the tiny (n x K) factors are padded so the in-kernel pl.ds row
    # slices stay in bounds; padded rows are zero and never enter the loss.
    # The big n_c x n_p arrays (cpi / mask / rec) are NOT padded or sliced.
    a_pad = jnp.pad(a, ((0, n_c_pad - n_c), (0, 0))) if n_c_pad != n_c else a
    b_pad = jnp.pad(b, ((0, n_p_pad - n_p), (0, 0))) if n_p_pad != n_p else b

    in_specs = [
        pl.BlockSpec((n_c_pad, K), lambda i, j: (0, 0)),   # A: VMEM-resident
        pl.BlockSpec((n_p_pad, K), lambda i, j: (0, 0)),   # B: VMEM-resident
        pl.BlockSpec((tm, tn), lambda i, j: (i, j)),       # cpi tile (streamed)
        pl.BlockSpec((tm, tn), lambda i, j: (i, j)),       # mask tile (streamed)
    ]
    ploss_spec = pl.BlockSpec((1, 1, 1, 1), lambda i, j: (i, j, 0, 0))
    ploss_shape = jax.ShapeDtypeStruct((gi, gj, 1, 1), jnp.float32)

    # Scoped-VMEM budget: streamed tiles double-buffered + resident factors.
    est = 2 * tm * tn * (4 + int(mask.dtype.itemsize))
    if compute_rec:
        est += 2 * tm * tn * 4
    est += 2 * (n_c_pad + n_p_pad) * K * 4
    vmem_limit = int(min(max(2 * est, 32 << 20), 56 << 20))

    compiler_params = pltpu.CompilerParams(
        dimension_semantics=("parallel", "parallel"),
        vmem_limit_bytes=vmem_limit,
    )

    statics = dict(tm=tm, tn=tn, n_c=n_c, n_p=n_p)
    if compute_rec:
        rec, ploss = pl.pallas_call(
            functools.partial(_rec_loss_kernel, **statics),
            out_shape=(jax.ShapeDtypeStruct((n_c, n_p), jnp.float32),
                       ploss_shape),
            grid=(gi, gj),
            in_specs=in_specs,
            out_specs=(pl.BlockSpec((tm, tn), lambda i, j: (i, j)), ploss_spec),
            compiler_params=compiler_params,
        )(a_pad, b_pad, cpi, mask)
    else:
        rec = None
        ploss = pl.pallas_call(
            functools.partial(_loss_only_kernel, **statics),
            out_shape=ploss_shape,
            grid=(gi, gj),
            in_specs=in_specs,
            out_specs=ploss_spec,
            compiler_params=compiler_params,
        )(a_pad, b_pad, cpi, mask)

    loss = jnp.sum(ploss)
    return loss, rec


# ---------------------------------------------------------------------------
# Pure-JAX reference mirroring the PyTorch forward exactly.
# ---------------------------------------------------------------------------
def _reference(params, ce, pe, cpi, mask_f32):
    compound = ce @ params["W_kc"] + params["b_kc"]
    protein = pe @ params["W_kp"] + params["b_kp"]
    entity = jnp.concatenate([compound, protein], axis=0)
    entity = jnp.concatenate([entity, entity], axis=1)
    n_c = ce.shape[0]
    fc = entity[:n_c] @ params["W_fc"] + params["b_fc"]
    fp = entity[n_c:] @ params["W_fp"] + params["b_fp"]
    fc = jnp.where(fc >= 0, fc, 0.01 * fc)
    fp = jnp.where(fp >= 0, fp, 0.01 * fp)
    fc = fc / jnp.maximum(jnp.linalg.norm(fc, axis=1, keepdims=True), 1e-12)
    fp = fp / jnp.maximum(jnp.linalg.norm(fp, axis=1, keepdims=True), 1e-12)
    rec = (fc @ params["W0p"]) @ (fp @ params["W1p"]).T
    tmp = mask_f32 * (rec - cpi)
    return jnp.sum(tmp * tmp), rec


def _xavier(key, shape):
    fan_in, fan_out = shape
    bound = jnp.sqrt(6.0 / (fan_in + fan_out))
    return jax.random.uniform(key, shape, jnp.float32, -bound, bound)


if __name__ == "__main__":
    # Non-divisible shapes so the ragged-edge path is exercised.
    n_compound = 300
    n_protein = 700
    dim_kge_compound = 12
    dim_kge_protein = 20
    dim_hidden = 32            # args.pna_hidden_dim
    dim_compound_final = 24    # args.imc_compound_dim
    dim_protein_final = 28     # args.imc_protein_dim
    dim_pred = 16              # args.imc_k

    key = jax.random.PRNGKey(0)
    ks = jax.random.split(key, 10)

    params = {
        "W_kc": _xavier(ks[0], (dim_kge_compound, dim_hidden)),
        "b_kc": jnp.zeros((1, dim_hidden), jnp.float32),
        "W_kp": _xavier(ks[1], (dim_kge_protein, dim_hidden)),
        "b_kp": jnp.zeros((1, dim_hidden), jnp.float32),
        "W_fc": _xavier(ks[2], (2 * dim_hidden, dim_compound_final)),
        "b_fc": jnp.zeros((1, dim_compound_final), jnp.float32),
        "W_fp": _xavier(ks[3], (2 * dim_hidden, dim_protein_final)),
        "b_fp": jnp.zeros((1, dim_protein_final), jnp.float32),
        "W0p": _xavier(ks[4], (dim_compound_final, dim_pred)),
        "W1p": _xavier(ks[5], (dim_protein_final, dim_pred)),
    }

    compound_embedding = jax.random.normal(
        ks[6], (n_compound, dim_kge_compound), jnp.float32)
    protein_embedding = jax.random.normal(
        ks[7], (n_protein, dim_kge_protein), jnp.float32)
    cpi = jax.random.uniform(ks[8], (n_compound, n_protein), jnp.float32)
    # Binary mask kept as int8 end-to-end (25% less HBM traffic in-kernel).
    mask = (jax.random.uniform(ks[9], (n_compound, n_protein)) > 0.5
            ).astype(jnp.int8)

    # TODO(synk): PNAConv layers / edge embeddings exist in __init__ but are
    # never used in forward() ("without_pna"), so they are intentionally omitted.

    # Small tiles here so the tiled + ragged-edge path (3x3 grid) is actually
    # exercised at demo sizes; production default is tile_m=512, tile_n=1024.
    loss, rec = pna_imc_forward(
        params, compound_embedding, protein_embedding, cpi, mask,
        tile_m=128, tile_n=256)
    loss_only, _ = pna_imc_forward(
        params, compound_embedding, protein_embedding, cpi, mask,
        tile_m=128, tile_n=256, compute_rec=False)
    # Production-default tiles (single full-dim block at these demo sizes).
    loss_big, rec_big = pna_imc_forward(
        params, compound_embedding, protein_embedding, cpi, mask)
    jax.block_until_ready((loss, rec, loss_only, loss_big, rec_big))

    ref_loss, ref_rec = _reference(
        params, compound_embedding, protein_embedding, cpi,
        mask.astype(jnp.float32))
    assert jnp.allclose(rec, ref_rec, atol=1e-4, rtol=1e-4), "rec mismatch"
    assert jnp.allclose(rec_big, ref_rec, atol=1e-4, rtol=1e-4), "rec mismatch (big)"
    assert jnp.allclose(loss, ref_loss, atol=1e-2, rtol=1e-4), "loss mismatch"
    assert jnp.allclose(loss_only, ref_loss, atol=1e-2, rtol=1e-4), "loss-only mismatch"
    assert jnp.allclose(loss_big, ref_loss, atol=1e-2, rtol=1e-4), "loss mismatch (big)"

    print("KERNEL_OK")
</pallas_src>

<mosaic_0001>
module attributes {stable_mosaic.version = 11 : i64} {
  func.func @_rec_loss_kernel(%arg0: i32, %arg1: i32, %arg2: memref<384x16xf32, #tpu.memory_space<vmem>>, %arg3: memref<768x16xf32, #tpu.memory_space<vmem>>, %arg4: memref<128x256xf32, #tpu.memory_space<vmem>>, %arg5: memref<128x256xi8, #tpu.memory_space<vmem>>, %arg6: memref<128x256xf32, #tpu.memory_space<vmem>>, %arg7: memref<1x1x1x1xf32, #tpu.memory_space<vmem>>) attributes {dimension_semantics = [#tpu.dimension_semantics<parallel>, #tpu.dimension_semantics<parallel>], iteration_bounds = array<i64: 3, 3>, scalar_prefetch = 0 : i64, scratch_operands = 0 : i64, tpu.core_type = #tpu.core_type<tc>, window_params = [{pipeline_mode = #tpu.pipeline_mode<synchronous>, transform_indices = @transform_0, window_bounds = array<i64: 384, 16>}, {pipeline_mode = #tpu.pipeline_mode<synchronous>, transform_indices = @transform_1, window_bounds = array<i64: 768, 16>}, {transform_indices = @transform_2, window_bounds = array<i64: 128, 256>}, {transform_indices = @transform_3, window_bounds = array<i64: 128, 256>}, {transform_indices = @transform_4, window_bounds = array<i64: 128, 256>}, {transform_indices = @transform_5, window_bounds = array<i64: 1, 1, 1, 1>}]} {
    %c128_i32 = arith.constant 128 : i32
    %0 = arith.muli %arg0, %c128_i32 : i32
    %1 = tpu.assume_multiple %0, 128 : i32
    %2 = arith.index_cast %1 : i32 to index
    %c0 = arith.constant 0 : index
    %3 = vector.load %arg2[%2, %c0] : memref<384x16xf32, #tpu.memory_space<vmem>>, vector<128x16xf32>
    %c256_i32 = arith.constant 256 : i32
    %4 = arith.muli %arg1, %c256_i32 : i32
    %5 = tpu.assume_multiple %4, 256 : i32
    %6 = arith.index_cast %5 : i32 to index
    %c0_0 = arith.constant 0 : index
    %7 = vector.load %arg3[%6, %c0_0] : memref<768x16xf32, #tpu.memory_space<vmem>>, vector<256x16xf32>
    %cst = arith.constant dense<0.000000e+00> : vector<128x256xf32>
    %8 = tpu.matmul %3, %7, %cst {dimension_numbers = #tpu.dot_dimension_numbers<[1], [1], [0], [0], [0, 0, 1, 0], [], []>} : vector<128x16xf32>, vector<256x16xf32>, vector<128x256xf32> -> vector<128x256xf32>
    %c0_1 = arith.constant 0 : index
    %c0_2 = arith.constant 0 : index
    %9 = vector.load %arg6[%c0_1, %c0_2] : memref<128x256xf32, #tpu.memory_space<vmem>>, vector<128x256xf32>
    tpu.vector_store %arg6[%c0_1, %c0_2], %8 {strides = array<i32>} : memref<128x256xf32, #tpu.memory_space<vmem>>, vector<128x256xf32>,
    %c0_3 = arith.constant 0 : index
    %c0_4 = arith.constant 0 : index
    %10 = vector.load %arg5[%c0_3, %c0_4] : memref<128x256xi8, #tpu.memory_space<vmem>>, vector<128x256xi8>
    %c0_5 = arith.constant 0 : index
    %c0_6 = arith.constant 0 : index
    %11 = vector.load %arg4[%c0_5, %c0_6] : memref<128x256xf32, #tpu.memory_space<vmem>>, vector<128x256xf32>
    %12 = arith.subf %8, %11 : vector<128x256xf32>
    %c0_i8 = arith.constant 0 : i8
    %13 = vector.broadcast %c0_i8 : i8 to vector<128x256xi8>
    %14 = arith.cmpi ne, %10, %13 : vector<128x256xi8>
    %cst_7 = arith.constant 0.000000e+00 : f32
    %15 = vector.broadcast %cst_7 : f32 to vector<128x256xf32>
    %16 = arith.select %14, %12, %15 : vector<128x256xi1>, vector<128x256xf32>
    %c128_i32_8 = arith.constant 128 : i32
    %17 = arith.muli %arg0, %c128_i32_8 : i32
    %18 = tpu.iota {dimensions = array<i32: 0>} : vector<128x256xi32>
    %19 = vector.broadcast %17 : i32 to vector<128x256xi32>
    %20 = arith.addi %19, %18 : vector<128x256xi32>
    %c300_i32 = arith.constant 300 : i32
    %21 = vector.broadcast %c300_i32 : i32 to vector<128x256xi32>
    %22 = arith.cmpi slt, %20, %21 : vector<128x256xi32>
    %cst_9 = arith.constant 0.000000e+00 : f32
    %23 = vector.broadcast %cst_9 : f32 to vector<128x256xf32>
    %24 = arith.select %22, %16, %23 : vector<128x256xi1>, vector<128x256xf32>
    %c256_i32_10 = arith.constant 256 : i32
    %25 = arith.muli %arg1, %c256_i32_10 : i32
    %26 = tpu.iota {dimensions = array<i32: 1>} : vector<128x256xi32>
    %27 = vector.broadcast %25 : i32 to vector<128x256xi32>
    %28 = arith.addi %27, %26 : vector<128x256xi32>
    %c700_i32 = arith.constant 700 : i32
    %29 = vector.broadcast %c700_i32 : i32 to vector<128x256xi32>
    %30 = arith.cmpi slt, %28, %29 : vector<128x256xi32>
    %cst_11 = arith.constant 0.000000e+00 : f32
    %31 = vector.broadcast %cst_11 : f32 to vector<128x256xf32>
    %32 = arith.select %30, %24, %31 : vector<128x256xi1>, vector<128x256xf32>
    %33 = arith.mulf %32, %32 : vector<128x256xf32>
    %34 = vector.shape_cast %33 : vector<128x256xf32> to vector<1x128x256xf32>
    %cst_12 = arith.constant dense<0.000000e+00> : vector<1xf32>
    %35 = vector.multi_reduction <add>, %34, %cst_12 [1, 2] : vector<1x128x256xf32> to vector<1xf32>
    %36 = vector.shape_cast %35 : vector<1xf32> to vector<1x1x1xf32>
    %37 = vector.extract %36[0, 0, 0] : f32 from vector<1x1x1xf32>
    %38 = vector.broadcast %37 : f32 to vector<1x1x1x1xf32>
    %c0_13 = arith.constant 0 : index
    %c0_14 = arith.constant 0 : index
    %c0_15 = arith.constant 0 : index
    %c0_16 = arith.constant 0 : index
    %39 = vector.load %arg7[%c0_13, %c0_14, %c0_15, %c0_16] : memref<1x1x1x1xf32, #tpu.memory_space<vmem>>, vector<1x1x1x1xf32>
    tpu.vector_store %arg7[%c0_13, %c0_14, %c0_15, %c0_16], %38 {strides = array<i32>} : memref<1x1x1x1xf32, #tpu.memory_space<vmem>>, vector<1x1x1x1xf32>,
    return
  }
  func.func @transform_0(%arg0: i32, %arg1: i32) -> (i32, i32) {
    %c0_i32 = arith.constant 0 : i32
    %c0_i32_0 = arith.constant 0 : i32
    %c0_i32_1 = arith.constant 0 : i32
    return %c0_i32, %c0_i32_0 : i32, i32
  }
  func.func @transform_1(%arg0: i32, %arg1: i32) -> (i32, i32) {
    %c0_i32 = arith.constant 0 : i32
    %c0_i32_0 = arith.constant 0 : i32
    %c0_i32_1 = arith.constant 0 : i32
    return %c0_i32, %c0_i32_0 : i32, i32
  }
  func.func @transform_2(%arg0: i32, %arg1: i32) -> (i32, i32) {
    %c0_i32 = arith.constant 0 : i32
    return %arg0, %arg1 : i32, i32
  }
  func.func @transform_3(%arg0: i32, %arg1: i32) -> (i32, i32) {
    %c0_i32 = arith.constant 0 : i32
    return %arg0, %arg1 : i32, i32
  }
  func.func @transform_4(%arg0: i32, %arg1: i32) -> (i32, i32) {
    %c0_i32 = arith.constant 0 : i32
    return %arg0, %arg1 : i32, i32
  }
  func.func @transform_5(%arg0: i32, %arg1: i32) -> (i32, i32, i32, i32) {
    %c0_i32 = arith.constant 0 : i32
    %c0_i32_0 = arith.constant 0 : i32
    %c0_i32_1 = arith.constant 0 : i32
    return %arg0, %arg1, %c0_i32, %c0_i32_0 : i32, i32, i32, i32
  }
}

</mosaic_0001>

<llo_original>
// kernel: tpu_custom_call.1
$region0: #{tpu_custom_call.1}
  #allocation0 [shape = 'u32[]', space=smem, size = 0x4, offset = 0x4, fixed_abs, tag = 'smem constant byte address 0x4 - core index']
  #allocation1 [shape = 'u32[72,128]{1,0:T(1,128)}', space=vmem, size = 0x9000, scoped, tag = 'internal scratch']
  %s0 = inlined_call_operand.vmem [shape: f32[384,16], index: 0, kind: input, shape index: {}]
  %s1 = inlined_call_operand.vmem [shape: f32[768,16], index: 1, kind: input, shape index: {}]
  %s2 = inlined_call_operand.hbm [shape: f32[300,700], index: 2, kind: input, shape index: {}]
  %s3 = inlined_call_operand.vmem [shape: s8[300,700], index: 3, kind: input, shape index: {}]
  %s4 = inlined_call_operand.hbm [shape: f32[300,700], index: 4, kind: output, shape index: {0}]
  %s5 = inlined_call_operand.vmem [shape: f32[3,3,1,1], index: 5, kind: output, shape index: {1}]
  %6 = xla_tuple %s4, %s5
  %s7 = sld [smem:[#allocation0]]
  $region109: #{tpu_custom_call.1} parent=0
    _
  %s9 = ssub.s32 1, %s7
  %s10 = scalar_select 0, %s9, %s7
  $region1: #{tpu_custom_call.1} parent=0
    #allocation2 [shape = 'u8[262144]{0}', space=vmem, size = 0x40000, scoped, tag = 'input window, operand 2']
    #allocation3 [shape = 's32[2]{0}', space=sflag, size = 0x8, scoped, tag = 'scoped memory for tpu_custom_call.1']
    #allocation4 [shape = 's32[2]{0}', space=sflag, size = 0x8, scoped, tag = 'scoped memory for tpu_custom_call.1']
    #allocation5 [shape = 'u8[65536]{0}', space=vmem, size = 0x10000, scoped, tag = 'input window, operand 3']
    #allocation6 [shape = 'u8[262144]{0}', space=vmem, size = 0x40000, scoped, tag = 'output window, operand 0']
    %11 = vsyncpa [#allocation3], 0
    %s12 = scalar_lea.sflag [#allocation3], 1
    %13 = vsyncpa %s12, 0
    %14 = vsyncpa [#allocation4], 0
    %s15 = scalar_lea.sflag [#allocation4], 1
    %16 = vsyncpa %s15, 0
    loop: start=0, step=1, limit=11
    $region2: #{tpu_custom_call.1} parent=1 // loop_pre_header
      _
    $region3: #{tpu_custom_call.1} parent=1 // loop_header
      %s18 = sphi 0, %s22
      %p19 = scmp.ge.s32.totalorder %s18, 11
      %s25 = sphi 0, %s37
      %s26 = sphi 0, %s33
      %s27 = sphi 0, %s25
      %s28 = sphi 0, %s26
      %s29 = sphi 0, %s27
      %s30 = sphi 0, %s28
      %s38 = sphi 0, %s38
      %s40 = sphi 0, %s38
      %s41 = sphi 0, %s40
      %s55 = sphi 0, %s41
      %s59 = sphi 0, %s59
      %s61 = sphi 0, %s59
      %s62 = sphi 0, %s61
      %s76 = sphi 0, %s62
      %s84 = sphi 0, %s86
      %s87 = sphi 0, %s84
      %s88 = sphi 0, %s87
      %s104 = sphi 0, %s88
      %s112 = sphi 0, %s114
      %s115 = sphi 0, %s112
      %s116 = sphi 0, %s115
      %s132 = sphi 0, %s116
      %s140 = sphi 0, %s142
      %s143 = sphi 0, %s140
      %s144 = sphi 0, %s143
      %s160 = sphi 0, %s144
      %s168 = sphi 0, %s170
      %s171 = sphi 0, %s168
      %s172 = sphi 0, %s171
      %s188 = sphi 0, %s172
    $region4: #{tpu_custom_call.1} parent=1 // loop_header_branch
      %21 = sbr.rel (%p19) target = $region8
    $region5: #{tpu_custom_call.1} parent=1 // loop_body
      %s23 = ssub.s32 %s18, 1
      %s24 = ssub.s32 %s18, 2
      %s31 = sadd.s32 1, %s26
      %p32 = scmp.ge.s32.totalorder %s31, 3
      %s33 = scalar_select %p32, 0, %s31
      %s34 = sadd.s32 1, %s25
      %s35 = scalar_select %p32, %s34, %s25
      %p36 = scmp.ge.s32.totalorder %s35, 3
      %s37 = scalar_select %p36, 0, %s35
      %s39 = sadd.s32 %s38, 1
      %p42 = scmp.eq.s32.totalorder %s18, 8
      %p43 = scmp.ne.s32.totalorder %s38, %s40
      %p44 = scmp.eq.s32.totalorder %s18, 0
      %p45 = por %p43, %p44
      %p46 = scmp.ne.s32.totalorder %s38, %s40
      %p47 = scmp.eq.s32.totalorder %s23, 8
      %p48 = por %p46, %p47
      %p49 = scmp.ne.s32.totalorder %s40, %s41
      %p50 = scmp.eq.s32.totalorder %s23, 0
      %p51 = por %p49, %p50
      %p52 = scmp.ne.s32.totalorder %s40, %s41
      %p53 = scmp.eq.s32.totalorder %s24, 8
      %p54 = por %p52, %p53
      %p56 = scmp.ne.s32.totalorder %s41, %s55
      %p57 = scmp.eq.s32.totalorder %s24, 0
      %p58 = por %p56, %p57
      %s60 = sadd.s32 %s59, 1
      %p63 = scmp.eq.s32.totalorder %s18, 8
      %p64 = scmp.ne.s32.totalorder %s59, %s61
      %p65 = scmp.eq.s32.totalorder %s18, 0
      %p66 = por %p64, %p65
      %p67 = scmp.ne.s32.totalorder %s59, %s61
      %p68 = scmp.eq.s32.totalorder %s23, 8
      %p69 = por %p67, %p68
      %p70 = scmp.ne.s32.totalorder %s61, %s62
      %p71 = scmp.eq.s32.totalorder %s23, 0
      %p72 = por %p70, %p71
      %p73 = scmp.ne.s32.totalorder %s61, %s62
      %p74 = scmp.eq.s32.totalorder %s24, 8
      %p75 = por %p73, %p74
      %p77 = scmp.ne.s32.totalorder %s62, %s76
      %p78 = scmp.eq.s32.totalorder %s24, 0
      %p79 = por %p77, %p78
      %s80 = ssub.s32 %s25, %s37
      %s81 = ssub.s32 %s26, %s33
      %s82 = sor.u32 %s80, %s81
      %p83 = scmp.eq.s32.totalorder %s82, 0
      %s85 = sadd.s32 %s84, 1
      %s86 = scalar_select %p83, %s84, %s85
      %p89 = pneg %p83
      %p90 = scmp.eq.s32.totalorder %s18, 8
      %p91 = por %p89, %p90
      %p92 = scmp.ne.s32.totalorder %s84, %s87
      %p93 = scmp.eq.s32.totalorder %s18, 0
      %p94 = por %p92, %p93
      %p95 = scmp.ne.s32.totalorder %s84, %s87
      %p96 = scmp.eq.s32.totalorder %s23, 8
      %p97 = por %p95, %p96
      %p98 = scmp.ne.s32.totalorder %s87, %s88
      %p99 = scmp.eq.s32.totalorder %s23, 0
      %p100 = por %p98, %p99
      %p101 = scmp.ne.s32.totalorder %s87, %s88
      %p102 = scmp.eq.s32.totalorder %s24, 8
      %p103 = por %p101, %p102
      %p105 = scmp.ne.s32.totalorder %s88, %s104
      %p106 = scmp.eq.s32.totalorder %s24, 0
      %p107 = por %p105, %p106
      %s108 = ssub.s32 %s25, %s37
      %s109 = ssub.s32 %s26, %s33
      %s110 = sor.u32 %s108, %s109
      %p111 = scmp.eq.s32.totalorder %s110, 0
      %s113 = sadd.s32 %s112, 1
      %s114 = scalar_select %p111, %s112, %s113
      %p117 = pneg %p111
      %p118 = scmp.eq.s32.totalorder %s18, 8
      %p119 = por %p117, %p118
      %p120 = scmp.ne.s32.totalorder %s112, %s115
      %p121 = scmp.eq.s32.totalorder %s18, 0
      %p122 = por %p120, %p121
      %p123 = scmp.ne.s32.totalorder %s112, %s115
      %p124 = scmp.eq.s32.totalorder %s23, 8
      %p125 = por %p123, %p124
      %p126 = scmp.ne.s32.totalorder %s115, %s116
      %p127 = scmp.eq.s32.totalorder %s23, 0
      %p128 = por %p126, %p127
      %p129 = scmp.ne.s32.totalorder %s115, %s116
      %p130 = scmp.eq.s32.totalorder %s24, 8
      %p131 = por %p129, %p130
      %p133 = scmp.ne.s32.totalorder %s116, %s132
      %p134 = scmp.eq.s32.totalorder %s24, 0
      %p135 = por %p133, %p134
      %s136 = ssub.s32 %s25, %s37
      %s137 = ssub.s32 %s26, %s33
      %s138 = sor.u32 %s136, %s137
      %p139 = scmp.eq.s32.totalorder %s138, 0
      %s141 = sadd.s32 %s140, 1
      %s142 = scalar_select %p139, %s140, %s141
      %p145 = pneg %p139
      %p146 = scmp.eq.s32.totalorder %s18, 8
      %p147 = por %p145, %p146
      %p148 = scmp.ne.s32.totalorder %s140, %s143
      %p149 = scmp.eq.s32.totalorder %s18, 0
      %p150 = por %p148, %p149
      %p151 = scmp.ne.s32.totalorder %s140, %s143
      %p152 = scmp.eq.s32.totalorder %s23, 8
      %p153 = por %p151, %p152
      %p154 = scmp.ne.s32.totalorder %s143, %s144
      %p155 = scmp.eq.s32.totalorder %s23, 0
      %p156 = por %p154, %p155
      %p157 = scmp.ne.s32.totalorder %s143, %s144
      %p158 = scmp.eq.s32.totalorder %s24, 8
      %p159 = por %p157, %p158
      %p161 = scmp.ne.s32.totalorder %s144, %s160
      %p162 = scmp.eq.s32.totalorder %s24, 0
      %p163 = por %p161, %p162
      %s164 = ssub.s32 %s25, %s37
      %s165 = ssub.s32 %s26, %s33
      %s166 = sor.u32 %s164, %s165
      %p167 = scmp.eq.s32.totalorder %s166, 0
      %s169 = sadd.s32 %s168, 1
      %s170 = scalar_select %p167, %s168, %s169
      %p173 = pneg %p167
      %p174 = scmp.eq.s32.totalorder %s18, 8
      %p175 = por %p173, %p174
      %p176 = scmp.ne.s32.totalorder %s168, %s171
      %p177 = scmp.eq.s32.totalorder %s18, 0
      %p178 = por %p176, %p177
      %p179 = scmp.ne.s32.totalorder %s168, %s171
      %p180 = scmp.eq.s32.totalorder %s23, 8
      %p181 = por %p179, %p180
      %p182 = scmp.ne.s32.totalorder %s171, %s172
      %p183 = scmp.eq.s32.totalorder %s23, 0
      %p184 = por %p182, %p183
      %p185 = scmp.ne.s32.totalorder %s171, %s172
      %p186 = scmp.eq.s32.totalorder %s24, 8
      %p187 = por %p185, %p186
      %p189 = scmp.ne.s32.totalorder %s172, %s188
      %p190 = scmp.eq.s32.totalorder %s24, 0
      %p191 = por %p189, %p190
      %p192 = scmp.le.s32.totalorder 1, %s18
      %p193 = scmp.lt.s32.totalorder %s18, 10
      %p194 = pnand %p192, %p193
      %p195 = pneg %p194
      // Predicated region
      $region9: #{tpu_custom_call.1} parent=5 // pred_check
        _
      $region10: #{tpu_custom_call.1} parent=5 // pred_check_branch
        %197 = sbr.rel (%p194) target = $region12
      $region11: #{tpu_custom_call.1} parent=5 // pred_region
        %s198 = ssub.s32 %s18, 1
        // Predicated region
        $region13: #{tpu_custom_call.1} parent=11 // pred_check
          %p199 = pneg %p51
        $region14: #{tpu_custom_call.1} parent=11 // pred_check_branch
          %201 = sbr.rel (%p199) target = $region16
        $region15: #{tpu_custom_call.1} parent=11 // pred_region
          _
        $region16: #{tpu_custom_call.1} parent=11 // pred_fallthru
          _
        // Predicated region
        $region17: #{tpu_custom_call.1} parent=11 // pred_check
          %p202 = pneg %p72
        $region18: #{tpu_custom_call.1} parent=11 // pred_check_branch
          %204 = sbr.rel (%p202) target = $region20
        $region19: #{tpu_custom_call.1} parent=11 // pred_region
          _
        $region20: #{tpu_custom_call.1} parent=11 // pred_fallthru
          _
      $region12: #{tpu_custom_call.1} parent=5 // pred_fallthru
        _
      %p205 = scmp.lt.s32.totalorder %s18, 9
      // Predicated region
      $region21: #{tpu_custom_call.1} parent=5 // pred_check
        %p206 = pneg %p205
      $region22: #{tpu_custom_call.1} parent=5 // pred_check_branch
        %208 = sbr.rel (%p206) target = $region24
      $region23: #{tpu_custom_call.1} parent=5 // pred_region
        // Predicated region
        $region25: #{tpu_custom_call.1} parent=23 // pred_check
          %p209 = pneg %p94
        $region26: #{tpu_custom_call.1} parent=23 // pred_check_branch
          %211 = sbr.rel (%p209) target = $region28
        $region27: #{tpu_custom_call.1} parent=23 // pred_region
          %s212 = sand.u32 %s84, 1
          %s213 = scalar_lea.sflag [#allocation3], %s212
          %s214 = sand.u32 %s84, 1
          %s215 = smul.addr %s214, 256
          %s216 = scalar_lea.vmem [#allocation2], %s215
          %s217 = smul.u32 16, %s25
          %s218 = smul.u32 2, %s26
          %s219 = ssub.s32 38, %s217
          %p220 = scmp.lt.s32.totalorder %s219, 16
          %s221 = scalar_select %p220, %s219, 16
          %s222 = smul.u32 8, %s221
          %s223 = smul.u32 %s222, 2
          %s224 = ssub.s32 256, %s223
          %s225 = sshll.u32 %s224, 4
          %226 = vsyncadd %s213, %s225
          %p227 = scmp.ne.s32.totalorder 0, %s223
          %s228 = smul.addr %s217, 6
          %s229 = sadd.s32 %s218, %s228
          %s230 = smul.addr %s229, 8
          %s231 = scalar_lea.hbm %s2, %s230
          %s232 = smul.u32 16, %s221
          %s233 = sshll.u32 %s231, 4
          %s234 = int_to_ptr.hbm [resolvable:$true] %s233
          %s235 = sshll.u32 %s216, 4
          %s236 = int_to_ptr.vmem [resolvable:$true] %s235
          %s237 = sshll.u32 %s232, 4
          %241 = dma.hbm_to_vmem [thread:$0]  (%p227), %s234, %s237, %s236, %s213, 768, 256, 16
        $region28: #{tpu_custom_call.1} parent=23 // pred_fallthru
          _
        // Predicated region
        $region29: #{tpu_custom_call.1} parent=23 // pred_check
          %p242 = pneg %p122
        $region30: #{tpu_custom_call.1} parent=23 // pred_check_branch
          %244 = sbr.rel (%p242) target = $region32
        $region31: #{tpu_custom_call.1} parent=23 // pred_region
          %s245 = sand.u32 %s112, 1
          %s246 = sand.u32 %s112, 1
          %s247 = smul.addr %s246, 64
          %s248 = scalar_lea.vmem [#allocation5], %s247
          %s249 = smul.u32 16, %s25
          %s250 = smul.u32 2, %s26
          %s251 = ssub.s32 38, %s249
          %p252 = scmp.lt.s32.totalorder %s251, 16
          %s253 = scalar_select %p252, %s251, 16
          %s254 = smul.u32 2, %s253
          %s255 = smul.u32 %s254, 2
          %p256 = scmp.ne.s32.totalorder 0, %s255
          %s257 = smul.addr %s249, 6
          %s258 = sadd.s32 %s250, %s257
          %s259 = smul.addr %s258, 2
          %s260 = scalar_lea.vmem %s3, %s259
          // Predicated region
          $region33: #{tpu_custom_call.1} parent=31 // pred_check
            %p261 = pneg %p256
          $region34: #{tpu_custom_call.1} parent=31 // pred_check_branch
            %263 = sbr.rel (%p261) target = $region36
          $region35: #{tpu_custom_call.1} parent=31 // pred_region
            // Predicated region
            $region37: #{tpu_custom_call.1} parent=35 // pred_check
              _
            $region38: #{tpu_custom_call.1} parent=35 // pred_check_branch
              %265 = sbr.rel target = $region40
            $region39: #{tpu_custom_call.1} parent=35 // pred_region
              // Predicated region
              $region59: #{tpu_custom_call.1} parent=39 // pred_check
                _
              $region60: #{tpu_custom_call.1} parent=39 // pred_check_branch
                %345 = sbr.rel (0) target = $region62
              $region61: #{tpu_custom_call.1} parent=39 // pred_region
                %s347 = ssub.s32 16, 1
                %s348 = sshrl.u32 %s253, 4
                // While loop
                $region63: #{tpu_custom_call.1} parent=61 // loop_pre_header
                  _
                $region64: #{tpu_custom_call.1} parent=61 // loop_header
                  %s350 = sphi 0, %s352
                  %p351 = scmp.ge.s32.totalorder %s350, %s348
                  %s355 = sphi 0, %s392
                  %s356 = sphi %s260, %s395
                  %s357 = sphi %s248, %s396
                $region65: #{tpu_custom_call.1} parent=61 // loop_header_branch
                  %354 = sbr.rel (%p351) target = $region69
                $region66: #{tpu_custom_call.1} parent=61 // loop_body
                  %v358 = vld [vmem:[%s356] sm:%s347]
                  %359 = vst [vmem:[%s357] sm:%s347] %v358
                  %v360 = vld [vmem:[%s356 + $0xc] sm:%s347]
                  %361 = vst [vmem:[%s357 + $0x4] sm:%s347] %v360
                  %v362 = vld [vmem:[%s356 + $0x18] sm:%s347]
                  %363 = vst [vmem:[%s357 + $0x8] sm:%s347] %v362
                  %v364 = vld [vmem:[%s356 + $0x24] sm:%s347]
                  %365 = vst [vmem:[%s357 + $0xc] sm:%s347] %v364
                  %v366 = vld [vmem:[%s356 + $0x30] sm:%s347]
                  %367 = vst [vmem:[%s357 + $0x10] sm:%s347] %v366
                  %v368 = vld [vmem:[%s356 + $0x3c] sm:%s347]
                  %369 = vst [vmem:[%s357 + $0x14] sm:%s347] %v368
                  %v370 = vld [vmem:[%s356 + $0x48] sm:%s347]
                  %371 = vst [vmem:[%s357 + $0x18] sm:%s347] %v370
                  %v372 = vld [vmem:[%s356 + $0x54] sm:%s347]
                  %373 = vst [vmem:[%s357 + $0x1c] sm:%s347] %v372
                  %v374 = vld [vmem:[%s356 + $0x60] sm:%s347]
                  %375 = vst [vmem:[%s357 + $0x20] sm:%s347] %v374
                  %v376 = vld [vmem:[%s356 + $0x6c] sm:%s347]
                  %377 = vst [vmem:[%s357 + $0x24] sm:%s347] %v376
                  %v378 = vld [vmem:[%s356 + $0x78] sm:%s347]
                  %379 = vst [vmem:[%s357 + $0x28] sm:%s347] %v378
                  %v380 = vld [vmem:[%s356 + $0x84] sm:%s347]
                  %381 = vst [vmem:[%s357 + $0x2c] sm:%s347] %v380
                  %v382 = vld [vmem:[%s356 + $0x90] sm:%s347]
                  %383 = vst [vmem:[%s357 + $0x30] sm:%s347] %v382
                  %v384 = vld [vmem:[%s356 + $0x9c] sm:%s347]
                  %385 = vst [vmem:[%s357 + $0x34] sm:%s347] %v384
                  %v386 = vld [vmem:[%s356 + $0xa8] sm:%s347]
                  %387 = vst [vmem:[%s357 + $0x38] sm:%s347] %v386
                  %v388 = vld [vmem:[%s356 + $0xb4] sm:%s347]
                  %389 = vst [vmem:[%s357 + $0x3c] sm:%s347] %v388
                  %s390 = sadd.s32 1, %s355
                  %p391 = scmp.ge.s32.totalorder %s390, %s348
                  %s392 = scalar_select %p391, 0, %s390
                  %s393 = smul.u32 %s392, 192
                  %s394 = smul.u32 %s392, 64
                  %s395 = scalar_lea.vmem %s260, %s393
                  %s396 = scalar_lea.vmem %s248, %s394 [#allocation5]
                $region67: #{tpu_custom_call.1} parent=61 // loop_footer
                  %s352 = sadd.s32 %s350, 1
                $region68: #{tpu_custom_call.1} parent=61 // loop_footer_branch
                  %349 = sbr.rel target = $region64
                $region69: #{tpu_custom_call.1} parent=61 // loop_exit
                  _
                %s397 = sshrl.u32 %s253, 4
                %s398 = sand.u32 %s253, 15
                %s399 = smul.u32 %s397, 16
                %s400 = smul.u32 12, %s399
                %s401 = scalar_lea.vmem %s260, %s400
                %s402 = smul.u32 4, %s399
                %s403 = scalar_lea.vmem %s248, %s402 [#allocation5]
                // While loop
                $region70: #{tpu_custom_call.1} parent=61 // loop_pre_header
                  _
                $region71: #{tpu_custom_call.1} parent=61 // loop_header
                  %s405 = sphi 0, %s407
                  %p406 = scmp.ge.s32.totalorder %s405, %s398
                  %s410 = sphi 0, %s417
                  %s411 = sphi %s401, %s420
                  %s412 = sphi %s403, %s421
                $region72: #{tpu_custom_call.1} parent=61 // loop_header_branch
                  %409 = sbr.rel (%p406) target = $region76
                $region73: #{tpu_custom_call.1} parent=61 // loop_body
                  %v413 = vld [vmem:[%s411] sm:%s347]
                  %414 = vst [vmem:[%s412] sm:%s347] %v413
                  %s415 = sadd.s32 1, %s410
                  %p416 = scmp.ge.s32.totalorder %s415, %s398
                  %s417 = scalar_select %p416, 0, %s415
                  %s418 = smul.u32 %s417, 12
                  %s419 = smul.u32 %s417, 4
                  %s420 = scalar_lea.vmem %s401, %s418
                  %s421 = scalar_lea.vmem %s403, %s419 [#allocation5]
                $region74: #{tpu_custom_call.1} parent=61 // loop_footer
                  %s407 = sadd.s32 %s405, 1
                $region75: #{tpu_custom_call.1} parent=61 // loop_footer_branch
                  %404 = sbr.rel target = $region71
                $region76: #{tpu_custom_call.1} parent=61 // loop_exit
                  _
              $region62: #{tpu_custom_call.1} parent=39 // pred_fallthru
                _
            $region40: #{tpu_custom_call.1} parent=35 // pred_fallthru
              _
            // Predicated region
            $region41: #{tpu_custom_call.1} parent=35 // pred_check
              _
            $region42: #{tpu_custom_call.1} parent=35 // pred_check_branch
              %267 = sbr.rel (0) target = $region44
            $region43: #{tpu_custom_call.1} parent=35 // pred_region
              %s269 = ssub.s32 16, 1
              %s270 = sshrl.u32 %s253, 4
              // While loop
              $region45: #{tpu_custom_call.1} parent=43 // loop_pre_header
                _
              $region46: #{tpu_custom_call.1} parent=43 // loop_header
                %s272 = sphi 0, %s274
                %p273 = scmp.ge.s32.totalorder %s272, %s270
                %s277 = sphi 0, %s314
                %s278 = sphi %s260, %s317
                %s279 = sphi %s248, %s318
              $region47: #{tpu_custom_call.1} parent=43 // loop_header_branch
                %276 = sbr.rel (%p273) target = $region51
              $region48: #{tpu_custom_call.1} parent=43 // loop_body
                %v280 = vld [vmem:[%s278] sm:%s269]
                %281 = vst [vmem:[%s279] sm:%s269] %v280
                %v282 = vld [vmem:[%s278 + $0xc] sm:%s269]
                %283 = vst [vmem:[%s279 + $0x4] sm:%s269] %v282
                %v284 = vld [vmem:[%s278 + $0x18] sm:%s269]
                %285 = vst [vmem:[%s279 + $0x8] sm:%s269] %v284
                %v286 = vld [vmem:[%s278 + $0x24] sm:%s269]
                %287 = vst [vmem:[%s279 + $0xc] sm:%s269] %v286
                %v288 = vld [vmem:[%s278 + $0x30] sm:%s269]
                %289 = vst [vmem:[%s279 + $0x10] sm:%s269] %v288
                %v290 = vld [vmem:[%s278 + $0x3c] sm:%s269]
                %291 = vst [vmem:[%s279 + $0x14] sm:%s269] %v290
                %v292 = vld [vmem:[%s278 + $0x48] sm:%s269]
                %293 = vst [vmem:[%s279 + $0x18] sm:%s269] %v292
                %v294 = vld [vmem:[%s278 + $0x54] sm:%s269]
                %295 = vst [vmem:[%s279 + $0x1c] sm:%s269] %v294
                %v296 = vld [vmem:[%s278 + $0x60] sm:%s269]
                %297 = vst [vmem:[%s279 + $0x20] sm:%s269] %v296
                %v298 = vld [vmem:[%s278 + $0x6c] sm:%s269]
                %299 = vst [vmem:[%s279 + $0x24] sm:%s269] %v298
                %v300 = vld [vmem:[%s278 + $0x78] sm:%s269]
                %301 = vst [vmem:[%s279 + $0x28] sm:%s269] %v300
                %v302 = vld [vmem:[%s278 + $0x84] sm:%s269]
                %303 = vst [vmem:[%s279 + $0x2c] sm:%s269] %v302
                %v304 = vld [vmem:[%s278 + $0x90] sm:%s269]
                %305 = vst [vmem:[%s279 + $0x30] sm:%s269] %v304
                %v306 = vld [vmem:[%s278 + $0x9c] sm:%s269]
                %307 = vst [vmem:[%s279 + $0x34] sm:%s269] %v306
                %v308 = vld [vmem:[%s278 + $0xa8] sm:%s269]
                %309 = vst [vmem:[%s279 + $0x38] sm:%s269] %v308
                %v310 = vld [vmem:[%s278 + $0xb4] sm:%s269]
                %311 = vst [vmem:[%s279 + $0x3c] sm:%s269] %v310
                %s312 = sadd.s32 1, %s277
                %p313 = scmp.ge.s32.totalorder %s312, %s270
                %s314 = scalar_select %p313, 0, %s312
                %s315 = smul.u32 %s314, 192
                %s316 = smul.u32 %s314, 64
                %s317 = scalar_lea.vmem %s260, %s315
                %s318 = scalar_lea.vmem %s248, %s316 [#allocation5]
              $region49: #{tpu_custom_call.1} parent=43 // loop_footer
                %s274 = sadd.s32 %s272, 1
              $region50: #{tpu_custom_call.1} parent=43 // loop_footer_branch
                %271 = sbr.rel target = $region46
              $region51: #{tpu_custom_call.1} parent=43 // loop_exit
                _
              %s319 = sshrl.u32 %s253, 4
              %s320 = sand.u32 %s253, 15
              %s321 = smul.u32 %s319, 16
              %s322 = smul.u32 12, %s321
              %s323 = scalar_lea.vmem %s260, %s322
              %s324 = smul.u32 4, %s321
              %s325 = scalar_lea.vmem %s248, %s324 [#allocation5]
              // While loop
              $region52: #{tpu_custom_call.1} parent=43 // loop_pre_header
                _
              $region53: #{tpu_custom_call.1} parent=43 // loop_header
                %s327 = sphi 0, %s329
                %p328 = scmp.ge.s32.totalorder %s327, %s320
                %s332 = sphi 0, %s339
                %s333 = sphi %s323, %s342
                %s334 = sphi %s325, %s343
              $region54: #{tpu_custom_call.1} parent=43 // loop_header_branch
                %331 = sbr.rel (%p328) target = $region58
              $region55: #{tpu_custom_call.1} parent=43 // loop_body
                %v335 = vld [vmem:[%s333] sm:%s269]
                %336 = vst [vmem:[%s334] sm:%s269] %v335
                %s337 = sadd.s32 1, %s332
                %p338 = scmp.ge.s32.totalorder %s337, %s320
                %s339 = scalar_select %p338, 0, %s337
                %s340 = smul.u32 %s339, 12
                %s341 = smul.u32 %s339, 4
                %s342 = scalar_lea.vmem %s323, %s340
                %s343 = scalar_lea.vmem %s325, %s341 [#allocation5]
              $region56: #{tpu_custom_call.1} parent=43 // loop_footer
                %s329 = sadd.s32 %s327, 1
              $region57: #{tpu_custom_call.1} parent=43 // loop_footer_branch
                %326 = sbr.rel target = $region53
              $region58: #{tpu_custom_call.1} parent=43 // loop_exit
                _
            $region44: #{tpu_custom_call.1} parent=35 // pred_fallthru
              _
          $region36: #{tpu_custom_call.1} parent=31 // pred_fallthru
            _
          %422 = vnop
        $region32: #{tpu_custom_call.1} parent=23 // pred_fallthru
          _
      $region24: #{tpu_custom_call.1} parent=5 // pred_fallthru
        _
      %p423 = scmp.le.s32.totalorder 1, %s18
      %p424 = scmp.lt.s32.totalorder %s18, 10
      %p425 = pnand %p423, %p424
      %p426 = pneg %p425
      // Predicated region
      $region77: #{tpu_custom_call.1} parent=5 // pred_check
        _
      $region78: #{tpu_custom_call.1} parent=5 // pred_check_branch
        %428 = sbr.rel (%p425) target = $region80
      $region79: #{tpu_custom_call.1} parent=5 // pred_region
        %s429 = ssub.s32 %s18, 1
        %s430 = sand.u32 %s87, 1
        %s431 = scalar_lea.sflag [#allocation3], %s430
        %s432 = sand.u32 %s87, 1
        %s433 = smul.addr %s432, 256
        %s434 = scalar_lea.vmem [#allocation2], %s433
        // Predicated region
        $region81: #{tpu_custom_call.1} parent=79 // pred_check
          %p435 = pneg %p100
        $region82: #{tpu_custom_call.1} parent=79 // pred_check_branch
          %437 = sbr.rel (%p435) target = $region84
        $region83: #{tpu_custom_call.1} parent=79 // pred_region
          %439 = dma.done %s431, 4096
        $region84: #{tpu_custom_call.1} parent=79 // pred_fallthru
          _
        %s440 = sand.u32 %s115, 1
        %s441 = sand.u32 %s115, 1
        %s442 = smul.addr %s441, 64
        %s443 = scalar_lea.vmem [#allocation5], %s442
        // Predicated region
        $region85: #{tpu_custom_call.1} parent=79 // pred_check
          %p444 = pneg %p128
        $region86: #{tpu_custom_call.1} parent=79 // pred_check_branch
          %446 = sbr.rel (%p444) target = $region88
        $region87: #{tpu_custom_call.1} parent=79 // pred_region
          _
        $region88: #{tpu_custom_call.1} parent=79 // pred_fallthru
          _
        %p447 = pneg %p51
        %p448 = pneg %p48
        %p449 = pneg %p72
        %p450 = pneg %p69
        %s451 = sand.u32 %s87, 1
        %s452 = scalar_lea.sflag [#allocation3], %s451
        %s453 = sand.u32 %s87, 1
        %s454 = smul.addr %s453, 256
        %s455 = scalar_lea.vmem [#allocation2], %s454
        %p456 = pneg %p100
        %p457 = pneg %p97
        %s458 = sand.u32 %s115, 1
        %s459 = sand.u32 %s115, 1
        %s460 = smul.addr %s459, 64
        %s461 = scalar_lea.vmem [#allocation5], %s460
        %p462 = pneg %p128
        %p463 = pneg %p125
        %p464 = pneg %p156
        %p465 = pneg %p153
        %s466 = sand.u32 %s143, 1
        %s467 = scalar_lea.sflag [#allocation4], %s466
        %s468 = sand.u32 %s143, 1
        %s469 = smul.addr %s468, 256
        %s470 = scalar_lea.vmem [#allocation6], %s469
        %p471 = pneg %p184
        %p472 = pneg %p181
        %p473 = scmp.lt.s32.totalorder %s27, 2
        %s474 = scalar_select %p473, %s27, 2
        %p475 = scmp.lt.s32.totalorder %s28, 2
        %s476 = scalar_select %p475, %s28, 2
        %s477 = smul.addr %s474, 3
        %s478 = sadd.s32 %s476, %s477
        %s479 = scalar_lea.vmem %s5, %s478
        %s480 = smul.u32 16, %s27
        %s481 = smul.u32 2, %s28
        %s482 = ssub.s32 38, %s480
        %p483 = scmp.lt.s32.totalorder %s482, 16
        %s484 = scalar_select %p483, %s482, 16
        %s485 = smul.u32 8, %s484
        %s486 = smul.u32 %s485, 2
        %s487 = smul.u32 16, %s27
        %s488 = smul.u32 2, %s28
        %s489 = ssub.s32 38, %s487
        %p490 = scmp.lt.s32.totalorder %s489, 16
        %s491 = scalar_select %p490, %s489, 16
        %s492 = smul.u32 2, %s491
        %s493 = smul.u32 %s492, 2
        %s494 = smul.u32 16, %s27
        %s495 = smul.u32 2, %s28
        %s496 = ssub.s32 38, %s494
        %p497 = scmp.lt.s32.totalorder %s496, 16
        %s498 = scalar_select %p497, %s496, 16
        %s499 = smul.u32 8, %s498
        %s500 = smul.u32 %s499, 2
        %p501 = scmp.lt.s32.totalorder %s27, 2
        %s502 = scalar_select %p501, %s27, 2
        %p503 = scmp.lt.s32.totalorder %s28, 2
        %s504 = scalar_select %p503, %s28, 2
        %s505 = smul.addr %s502, 3
        %s506 = sadd.s32 %s504, %s505
        %s507 = scalar_lea.vmem %s5, %s506
        %s510 = smul.u32 %s27, 128
        %s511 = scalar_lea.vmem %s0, %s510
        %v512 = vld [vmem:[%s511] sm:$0xff]
        %v513 = vld [vmem:[%s511 + $0x8] sm:$0xff]
        %v514 = vld [vmem:[%s511 + $0x10] sm:$0xff]
        %v515 = vld [vmem:[%s511 + $0x18] sm:$0xff]
        %v516 = vld [vmem:[%s511 + $0x20] sm:$0xff]
        %v517 = vld [vmem:[%s511 + $0x28] sm:$0xff]
        %v518 = vld [vmem:[%s511 + $0x30] sm:$0xff]
        %v519 = vld [vmem:[%s511 + $0x38] sm:$0xff]
        %v520 = vld [vmem:[%s511 + $0x40] sm:$0xff]
        %v521 = vld [vmem:[%s511 + $0x48] sm:$0xff]
        %v522 = vld [vmem:[%s511 + $0x50] sm:$0xff]
        %v523 = vld [vmem:[%s511 + $0x58] sm:$0xff]
        %v524 = vld [vmem:[%s511 + $0x60] sm:$0xff]
        %v525 = vld [vmem:[%s511 + $0x68] sm:$0xff]
        %v526 = vld [vmem:[%s511 + $0x70] sm:$0xff]
        %v527 = vld [vmem:[%s511 + $0x78] sm:$0xff]
        %s528 = smul.u32 %s28, 256
        %s529 = scalar_lea.vmem %s1, %s528
        %v530 = vld [vmem:[%s529] sm:$0xff]
        %v531 = vld [vmem:[%s529 + $0x8] sm:$0xff]
        %v532 = vld [vmem:[%s529 + $0x10] sm:$0xff]
        %v533 = vld [vmem:[%s529 + $0x18] sm:$0xff]
        %v534 = vld [vmem:[%s529 + $0x20] sm:$0xff]
        %v535 = vld [vmem:[%s529 + $0x28] sm:$0xff]
        %v536 = vld [vmem:[%s529 + $0x30] sm:$0xff]
        %v537 = vld [vmem:[%s529 + $0x38] sm:$0xff]
        %v538 = vld [vmem:[%s529 + $0x40] sm:$0xff]
        %v539 = vld [vmem:[%s529 + $0x48] sm:$0xff]
        %v540 = vld [vmem:[%s529 + $0x50] sm:$0xff]
        %v541 = vld [vmem:[%s529 + $0x58] sm:$0xff]
        %v542 = vld [vmem:[%s529 + $0x60] sm:$0xff]
        %v543 = vld [vmem:[%s529 + $0x68] sm:$0xff]
        %v544 = vld [vmem:[%s529 + $0x70] sm:$0xff]
        %v545 = vld [vmem:[%s529 + $0x78] sm:$0xff]
        %v546 = vld [vmem:[%s529 + $0x80] sm:$0xff]
        %v547 = vld [vmem:[%s529 + $0x88] sm:$0xff]
        %v548 = vld [vmem:[%s529 + $0x90] sm:$0xff]
        %v549 = vld [vmem:[%s529 + $0x98] sm:$0xff]
        %v550 = vld [vmem:[%s529 + $0xa0] sm:$0xff]
        %v551 = vld [vmem:[%s529 + $0xa8] sm:$0xff]
        %v552 = vld [vmem:[%s529 + $0xb0] sm:$0xff]
        %v553 = vld [vmem:[%s529 + $0xb8] sm:$0xff]
        %v554 = vld [vmem:[%s529 + $0xc0] sm:$0xff]
        %v555 = vld [vmem:[%s529 + $0xc8] sm:$0xff]
        %v556 = vld [vmem:[%s529 + $0xd0] sm:$0xff]
        %v557 = vld [vmem:[%s529 + $0xd8] sm:$0xff]
        %v558 = vld [vmem:[%s529 + $0xe0] sm:$0xff]
        %v559 = vld [vmem:[%s529 + $0xe8] sm:$0xff]
        %v560 = vld [vmem:[%s529 + $0xf0] sm:$0xff]
        %v561 = vld [vmem:[%s529 + $0xf8] sm:$0xff]
        %vm562 = vcmask 130048
        %v564 = vsel %vm562, %v512, 0
        %v567 = vsel %vm562, %v513, 0
        %v570 = vsel %vm562, %v514, 0
        %v573 = vsel %vm562, %v515, 0
        %v576 = vsel %vm562, %v516, 0
        %v579 = vsel %vm562, %v517, 0
        %v582 = vsel %vm562, %v518, 0
        %v585 = vsel %vm562, %v519, 0
        %v588 = vsel %vm562, %v520, 0
        %v591 = vsel %vm562, %v521, 0
        %v594 = vsel %vm562, %v522, 0
        %v597 = vsel %vm562, %v523, 0
        %v600 = vsel %vm562, %v524, 0
        %v603 = vsel %vm562, %v525, 0
        %v606 = vsel %vm562, %v526, 0
        %v609 = vsel %vm562, %v527, 0
        %v612 = vsel %vm562, %v530, 0
        %v615 = vsel %vm562, %v531, 0
        %v618 = vsel %vm562, %v532, 0
        %v621 = vsel %vm562, %v533, 0
        %v624 = vsel %vm562, %v534, 0
        %v627 = vsel %vm562, %v535, 0
        %v630 = vsel %vm562, %v536, 0
        %v633 = vsel %vm562, %v537, 0
        %v636 = vsel %vm562, %v538, 0
        %v639 = vsel %vm562, %v539, 0
        %v642 = vsel %vm562, %v540, 0
        %v645 = vsel %vm562, %v541, 0
        %v648 = vsel %vm562, %v542, 0
        %v651 = vsel %vm562, %v543, 0
        %v654 = vsel %vm562, %v544, 0
        %v657 = vsel %vm562, %v545, 0
        %v660 = vsel %vm562, %v546, 0
        %v663 = vsel %vm562, %v547, 0
        %v666 = vsel %vm562, %v548, 0
        %v669 = vsel %vm562, %v549, 0
        %v672 = vsel %vm562, %v550, 0
        %v675 = vsel %vm562, %v551, 0
        %v678 = vsel %vm562, %v552, 0
        %v681 = vsel %vm562, %v553, 0
        %v684 = vsel %vm562, %v554, 0
        %v687 = vsel %vm562, %v555, 0
        %v690 = vsel %vm562, %v556, 0
        %v693 = vsel %vm562, %v557, 0
        %v696 = vsel %vm562, %v558, 0
        %v699 = vsel %vm562, %v559, 0
        %v702 = vsel %vm562, %v560, 0
        %v705 = vsel %vm562, %v561, 0
        %707 = vmatpush.xpose.msra.mxu0 %v657
        %708 = vmatpush.xpose.msra.mxu0 %v654
        %709 = vmatpush.xpose.msra.mxu0 %v651
        %710 = vmatpush.xpose.msra.mxu0 %v648
        %711 = vmatpush.xpose.msra.mxu0 %v645
        %712 = vmatpush.xpose.msra.mxu0 %v642
        %713 = vmatpush.xpose.msra.mxu0 %v639
        %714 = vmatpush.xpose.msra.mxu0 %v636
        %715 = vmatpush.xpose.msra.mxu0 %v633
        %716 = vmatpush.xpose.msra.mxu0 %v630
        %717 = vmatpush.xpose.msra.mxu0 %v627
        %718 = vmatpush.xpose.msra.mxu0 %v624
        %719 = vmatpush.xpose.msra.mxu0 %v621
        %720 = vmatpush.xpose.msra.mxu0 %v618
        %721 = vmatpush.xpose.msra.mxu0 %v615
        %722 = vmatpush.xpose.msra.mxu0 %v612
        %723 = vmatmul.f32.gmra.mxu0 %v564
        %v724 = vpop.f32.mrf.mxu0
        %v725 = vadd.f32 0.0, %v724
        %726 = vmatmul.f32.gmra.mxu0 %v567
        %v727 = vpop.f32.mrf.mxu0
        %v728 = vadd.f32 0.0, %v727
        %729 = vmatmul.f32.gmra.mxu0 %v570
        %v730 = vpop.f32.mrf.mxu0
        %v731 = vadd.f32 0.0, %v730
        %732 = vmatmul.f32.gmra.mxu0 %v573
        %v733 = vpop.f32.mrf.mxu0
        %v734 = vadd.f32 0.0, %v733
        %735 = vmatmul.f32.gmra.mxu0 %v576
        %v736 = vpop.f32.mrf.mxu0
        %v737 = vadd.f32 0.0, %v736
        %738 = vmatmul.f32.gmra.mxu0 %v579
        %v739 = vpop.f32.mrf.mxu0
        %v740 = vadd.f32 0.0, %v739
        %741 = vmatmul.f32.gmra.mxu0 %v582
        %v742 = vpop.f32.mrf.mxu0
        %v743 = vadd.f32 0.0, %v742
        %744 = vmatmul.f32.gmra.mxu0 %v585
        %v745 = vpop.f32.mrf.mxu0
        %v746 = vadd.f32 0.0, %v745
        %747 = vmatmul.f32.gmra.mxu0 %v588
        %v748 = vpop.f32.mrf.mxu0
        %v749 = vadd.f32 0.0, %v748
        %750 = vmatmul.f32.gmra.mxu0 %v591
        %v751 = vpop.f32.mrf.mxu0
        %v752 = vadd.f32 0.0, %v751
        %753 = vmatmul.f32.gmra.mxu0 %v594
        %v754 = vpop.f32.mrf.mxu0
        %v755 = vadd.f32 0.0, %v754
        %756 = vmatmul.f32.gmra.mxu0 %v597
        %v757 = vpop.f32.mrf.mxu0
        %v758 = vadd.f32 0.0, %v757
        %759 = vmatmul.f32.gmra.mxu0 %v600
        %v760 = vpop.f32.mrf.mxu0
        %v761 = vadd.f32 0.0, %v760
        %762 = vmatmul.f32.gmra.mxu0 %v603
        %v763 = vpop.f32.mrf.mxu0
        %v764 = vadd.f32 0.0, %v763
        %765 = vmatmul.f32.gmra.mxu0 %v606
        %v766 = vpop.f32.mrf.mxu0
        %v767 = vadd.f32 0.0, %v766
        %768 = vmatmul.f32.gmra.mxu0 %v609
        %v769 = vpop.f32.mrf.mxu0
        %v770 = vadd.f32 0.0, %v769
        %771 = vdwg.mxu0
        %772 = vmatpush.xpose.msra.mxu0 %v705
        %773 = vmatpush.xpose.msra.mxu0 %v702
        %774 = vmatpush.xpose.msra.mxu0 %v699
        %775 = vmatpush.xpose.msra.mxu0 %v696
        %776 = vmatpush.xpose.msra.mxu0 %v693
        %777 = vmatpush.xpose.msra.mxu0 %v690
        %778 = vmatpush.xpose.msra.mxu0 %v687
        %779 = vmatpush.xpose.msra.mxu0 %v684
        %780 = vmatpush.xpose.msra.mxu0 %v681
        %781 = vmatpush.xpose.msra.mxu0 %v678
        %782 = vmatpush.xpose.msra.mxu0 %v675
        %783 = vmatpush.xpose.msra.mxu0 %v672
        %784 = vmatpush.xpose.msra.mxu0 %v669
        %785 = vmatpush.xpose.msra.mxu0 %v666
        %786 = vmatpush.xpose.msra.mxu0 %v663
        %787 = vmatpush.xpose.msra.mxu0 %v660
        %788 = vmatmul.f32.gmra.mxu0 %v564
        %v789 = vpop.f32.mrf.mxu0
        %v790 = vadd.f32 0.0, %v789
        %791 = vmatmul.f32.gmra.mxu0 %v567
        %v792 = vpop.f32.mrf.mxu0
        %v793 = vadd.f32 0.0, %v792
        %794 = vmatmul.f32.gmra.mxu0 %v570
        %v795 = vpop.f32.mrf.mxu0
        %v796 = vadd.f32 0.0, %v795
        %797 = vmatmul.f32.gmra.mxu0 %v573
        %v798 = vpop.f32.mrf.mxu0
        %v799 = vadd.f32 0.0, %v798
        %800 = vmatmul.f32.gmra.mxu0 %v576
        %v801 = vpop.f32.mrf.mxu0
        %v802 = vadd.f32 0.0, %v801
        %803 = vmatmul.f32.gmra.mxu0 %v579
        %v804 = vpop.f32.mrf.mxu0
        %v805 = vadd.f32 0.0, %v804
        %806 = vmatmul.f32.gmra.mxu0 %v582
        %v807 = vpop.f32.mrf.mxu0
        %v808 = vadd.f32 0.0, %v807
        %809 = vmatmul.f32.gmra.mxu0 %v585
        %v810 = vpop.f32.mrf.mxu0
        %v811 = vadd.f32 0.0, %v810
        %812 = vmatmul.f32.gmra.mxu0 %v588
        %v813 = vpop.f32.mrf.mxu0
        %v814 = vadd.f32 0.0, %v813
        %815 = vmatmul.f32.gmra.mxu0 %v591
        %v816 = vpop.f32.mrf.mxu0
        %v817 = vadd.f32 0.0, %v816
        %818 = vmatmul.f32.gmra.mxu0 %v594
        %v819 = vpop.f32.mrf.mxu0
        %v820 = vadd.f32 0.0, %v819
        %821 = vmatmul.f32.gmra.mxu0 %v597
        %v822 = vpop.f32.mrf.mxu0
        %v823 = vadd.f32 0.0, %v822
        %824 = vmatmul.f32.gmra.mxu0 %v600
        %v825 = vpop.f32.mrf.mxu0
        %v826 = vadd.f32 0.0, %v825
        %827 = vmatmul.f32.gmra.mxu0 %v603
        %v828 = vpop.f32.mrf.mxu0
        %v829 = vadd.f32 0.0, %v828
        %830 = vmatmul.f32.gmra.mxu0 %v606
        %v831 = vpop.f32.mrf.mxu0
        %v832 = vadd.f32 0.0, %v831
        %833 = vmatmul.f32.gmra.mxu0 %v609
        %v834 = vpop.f32.mrf.mxu0
        %v835 = vadd.f32 0.0, %v834
        %836 = vdwg.mxu0
        %837 = vst [vmem:[%s470] sm:$0xff] %v725
        %838 = vst [vmem:[%s470 + $0x8] sm:$0xff] %v790
        %839 = vst [vmem:[%s470 + $0x10] sm:$0xff] %v728
        %840 = vst [vmem:[%s470 + $0x18] sm:$0xff] %v793
        %841 = vst [vmem:[%s470 + $0x20] sm:$0xff] %v731
        %842 = vst [vmem:[%s470 + $0x28] sm:$0xff] %v796
        %843 = vst [vmem:[%s470 + $0x30] sm:$0xff] %v734
        %844 = vst [vmem:[%s470 + $0x38] sm:$0xff] %v799
        %845 = vst [vmem:[%s470 + $0x40] sm:$0xff] %v737
        %846 = vst [vmem:[%s470 + $0x48] sm:$0xff] %v802
        %847 = vst [vmem:[%s470 + $0x50] sm:$0xff] %v740
        %848 = vst [vmem:[%s470 + $0x58] sm:$0xff] %v805
        %849 = vst [vmem:[%s470 + $0x60] sm:$0xff] %v743
        %850 = vst [vmem:[%s470 + $0x68] sm:$0xff] %v808
        %851 = vst [vmem:[%s470 + $0x70] sm:$0xff] %v746
        %852 = vst [vmem:[%s470 + $0x78] sm:$0xff] %v811
        %853 = vst [vmem:[%s470 + $0x80] sm:$0xff] %v749
        %854 = vst [vmem:[%s470 + $0x88] sm:$0xff] %v814
        %855 = vst [vmem:[%s470 + $0x90] sm:$0xff] %v752
        %856 = vst [vmem:[%s470 + $0x98] sm:$0xff] %v817
        %857 = vst [vmem:[%s470 + $0xa0] sm:$0xff] %v755
        %858 = vst [vmem:[%s470 + $0xa8] sm:$0xff] %v820
        %859 = vst [vmem:[%s470 + $0xb0] sm:$0xff] %v758
        %860 = vst [vmem:[%s470 + $0xb8] sm:$0xff] %v823
        %861 = vst [vmem:[%s470 + $0xc0] sm:$0xff] %v761
        %862 = vst [vmem:[%s470 + $0xc8] sm:$0xff] %v826
        %863 = vst [vmem:[%s470 + $0xd0] sm:$0xff] %v764
        %864 = vst [vmem:[%s470 + $0xd8] sm:$0xff] %v829
        %865 = vst [vmem:[%s470 + $0xe0] sm:$0xff] %v767
        %866 = vst [vmem:[%s470 + $0xe8] sm:$0xff] %v832
        %867 = vst [vmem:[%s470 + $0xf0] sm:$0xff] %v770
        %868 = vst [vmem:[%s470 + $0xf8] sm:$0xff] %v835
        %v869 = vld [vmem:[%s443] sm:$0xf]
        %v870 = vld [vmem:[%s443 + $0x4] sm:$0xf]
        %v871 = vld [vmem:[%s443 + $0x8] sm:$0xf]
        %v872 = vld [vmem:[%s443 + $0xc] sm:$0xf]
        %v873 = vld [vmem:[%s443 + $0x10] sm:$0xf]
        %v874 = vld [vmem:[%s443 + $0x14] sm:$0xf]
        %v875 = vld [vmem:[%s443 + $0x18] sm:$0xf]
        %v876 = vld [vmem:[%s443 + $0x1c] sm:$0xf]
        %v877 = vld [vmem:[%s443 + $0x20] sm:$0xf]
        %v878 = vld [vmem:[%s443 + $0x24] sm:$0xf]
        %v879 = vld [vmem:[%s443 + $0x28] sm:$0xf]
        %v880 = vld [vmem:[%s443 + $0x2c] sm:$0xf]
        %v881 = vld [vmem:[%s443 + $0x30] sm:$0xf]
        %v882 = vld [vmem:[%s443 + $0x34] sm:$0xf]
        %v883 = vld [vmem:[%s443 + $0x38] sm:$0xf]
        %v884 = vld [vmem:[%s443 + $0x3c] sm:$0xf]
        %v885 = vld [vmem:[%s434] sm:$0xff]
        %v886 = vld [vmem:[%s434 + $0x8] sm:$0xff]
        %v887 = vld [vmem:[%s434 + $0x10] sm:$0xff]
        %v888 = vld [vmem:[%s434 + $0x18] sm:$0xff]
        %v889 = vld [vmem:[%s434 + $0x20] sm:$0xff]
        %v890 = vld [vmem:[%s434 + $0x28] sm:$0xff]
        %v891 = vld [vmem:[%s434 + $0x30] sm:$0xff]
        %v892 = vld [vmem:[%s434 + $0x38] sm:$0xff]
        %v893 = vld [vmem:[%s434 + $0x40] sm:$0xff]
        %v894 = vld [vmem:[%s434 + $0x48] sm:$0xff]
        %v895 = vld [vmem:[%s434 + $0x50] sm:$0xff]
        %v896 = vld [vmem:[%s434 + $0x58] sm:$0xff]
        %v897 = vld [vmem:[%s434 + $0x60] sm:$0xff]
        %v898 = vld [vmem:[%s434 + $0x68] sm:$0xff]
        %v899 = vld [vmem:[%s434 + $0x70] sm:$0xff]
        %v900 = vld [vmem:[%s434 + $0x78] sm:$0xff]
        %v901 = vld [vmem:[%s434 + $0x80] sm:$0xff]
        %v902 = vld [vmem:[%s434 + $0x88] sm:$0xff]
        %v903 = vld [vmem:[%s434 + $0x90] sm:$0xff]
        %v904 = vld [vmem:[%s434 + $0x98] sm:$0xff]
        %v905 = vld [vmem:[%s434 + $0xa0] sm:$0xff]
        %v906 = vld [vmem:[%s434 + $0xa8] sm:$0xff]
        %v907 = vld [vmem:[%s434 + $0xb0] sm:$0xff]
        %v908 = vld [vmem:[%s434 + $0xb8] sm:$0xff]
        %v909 = vld [vmem:[%s434 + $0xc0] sm:$0xff]
        %v910 = vld [vmem:[%s434 + $0xc8] sm:$0xff]
        %v911 = vld [vmem:[%s434 + $0xd0] sm:$0xff]
        %v912 = vld [vmem:[%s434 + $0xd8] sm:$0xff]
        %v913 = vld [vmem:[%s434 + $0xe0] sm:$0xff]
        %v914 = vld [vmem:[%s434 + $0xe8] sm:$0xff]
        %v915 = vld [vmem:[%s434 + $0xf0] sm:$0xff]
        %v916 = vld [vmem:[%s434 + $0xf8] sm:$0xff]
        %v917 = vsub.f32 %v725, %v885
        %v918 = vsub.f32 %v790, %v886
        %v919 = vsub.f32 %v728, %v887
        %v920 = vsub.f32 %v793, %v888
        %v921 = vsub.f32 %v731, %v889
        %v922 = vsub.f32 %v796, %v890
        %v923 = vsub.f32 %v734, %v891
        %v924 = vsub.f32 %v799, %v892
        %v925 = vsub.f32 %v737, %v893
        %v926 = vsub.f32 %v802, %v894
        %v927 = vsub.f32 %v740, %v895
        %v928 = vsub.f32 %v805, %v896
        %v929 = vsub.f32 %v743, %v897
        %v930 = vsub.f32 %v808, %v898
        %v931 = vsub.f32 %v746, %v899
        %v932 = vsub.f32 %v811, %v900
        %v933 = vsub.f32 %v749, %v901
        %v934 = vsub.f32 %v814, %v902
        %v935 = vsub.f32 %v752, %v903
        %v936 = vsub.f32 %v817, %v904
        %v937 = vsub.f32 %v755, %v905
        %v938 = vsub.f32 %v820, %v906
        %v939 = vsub.f32 %v758, %v907
        %v940 = vsub.f32 %v823, %v908
        %v941 = vsub.f32 %v761, %v909
        %v942 = vsub.f32 %v826, %v910
        %v943 = vsub.f32 %v764, %v911
        %v944 = vsub.f32 %v829, %v912
        %v945 = vsub.f32 %v767, %v913
        %v946 = vsub.f32 %v832, %v914
        %v947 = vsub.f32 %v770, %v915
        %v948 = vsub.f32 %v835, %v916
        %vm949 = vnez %v869
        %vm950 = vnez %v870
        %vm951 = vnez %v871
        %vm952 = vnez %v872
        %vm953 = vnez %v873
        %vm954 = vnez %v874
        %vm955 = vnez %v875
        %vm956 = vnez %v876
        %vm957 = vnez %v877
        %vm958 = vnez %v878
        %vm959 = vnez %v879
        %vm960 = vnez %v880
        %vm961 = vnez %v881
        %vm962 = vnez %v882
        %vm963 = vnez %v883
        %vm964 = vnez %v884
        %v965 = vsel %vm949, 16843009, 0
        %v966 = vsel %vm950, 16843009, 0
        %v967 = vsel %vm951, 16843009, 0
        %v968 = vsel %vm952, 16843009, 0
        %v969 = vsel %vm953, 16843009, 0
        %v970 = vsel %vm954, 16843009, 0
        %v971 = vsel %vm955, 16843009, 0
        %v972 = vsel %vm956, 16843009, 0
        %v973 = vsel %vm957, 16843009, 0
        %v974 = vsel %vm958, 16843009, 0
        %v975 = vsel %vm959, 16843009, 0
        %v976 = vsel %vm960, 16843009, 0
        %v977 = vsel %vm961, 16843009, 0
        %v978 = vsel %vm962, 16843009, 0
        %v979 = vsel %vm963, 16843009, 0
        %v980 = vsel %vm964, 16843009, 0
        %v981 = vunpack.c.0.s8 %v965
        %v982 = vunpack.c.1.s8 %v965
        %v983 = vunpack.c.0.s8 %v966
        %v984 = vunpack.c.1.s8 %v966
        %v985 = vunpack.c.0.s8 %v967
        %v986 = vunpack.c.1.s8 %v967
        %v987 = vunpack.c.0.s8 %v968
        %v988 = vunpack.c.1.s8 %v968
        %v989 = vunpack.c.0.s8 %v969
        %v990 = vunpack.c.1.s8 %v969
        %v991 = vunpack.c.0.s8 %v970
        %v992 = vunpack.c.1.s8 %v970
        %v993 = vunpack.c.0.s8 %v971
        %v994 = vunpack.c.1.s8 %v971
        %v995 = vunpack.c.0.s8 %v972
        %v996 = vunpack.c.1.s8 %v972
        %v997 = vunpack.c.0.s8 %v973
        %v998 = vunpack.c.1.s8 %v973
        %v999 = vunpack.c.0.s8 %v974
        %v1000 = vunpack.c.1.s8 %v974
        %v1001 = vunpack.c.0.s8 %v975
        %v1002 = vunpack.c.1.s8 %v975
        %v1003 = vunpack.c.0.s8 %v976
        %v1004 = vunpack.c.1.s8 %v976
        %v1005 = vunpack.c.0.s8 %v977
        %v1006 = vunpack.c.1.s8 %v977
        %v1007 = vunpack.c.0.s8 %v978
        %v1008 = vunpack.c.1.s8 %v978
        %v1009 = vunpack.c.0.s8 %v979
        %v1010 = vunpack.c.1.s8 %v979
        %v1011 = vunpack.c.0.s8 %v980
        %v1012 = vunpack.c.1.s8 %v980
        %vm1013 = vcmp.ne.s32.totalorder %v981, 0
        %vm1014 = vcmp.ne.s32.totalorder %v982, 0
        %vm1015 = vcmp.ne.s32.totalorder %v983, 0
        %vm1016 = vcmp.ne.s32.totalorder %v984, 0
        %vm1017 = vcmp.ne.s32.totalorder %v985, 0
        %vm1018 = vcmp.ne.s32.totalorder %v986, 0
        %vm1019 = vcmp.ne.s32.totalorder %v987, 0
        %vm1020 = vcmp.ne.s32.totalorder %v988, 0
        %vm1021 = vcmp.ne.s32.totalorder %v989, 0
        %vm1022 = vcmp.ne.s32.totalorder %v990, 0
        %vm1023 = vcmp.ne.s32.totalorder %v991, 0
        %vm1024 = vcmp.ne.s32.totalorder %v992, 0
        %vm1025 = vcmp.ne.s32.totalorder %v993, 0
        %vm1026 = vcmp.ne.s32.totalorder %v994, 0
        %vm1027 = vcmp.ne.s32.totalorder %v995, 0
        %vm1028 = vcmp.ne.s32.totalorder %v996, 0
        %vm1029 = vcmp.ne.s32.totalorder %v997, 0
        %vm1030 = vcmp.ne.s32.totalorder %v998, 0
        %vm1031 = vcmp.ne.s32.totalorder %v999, 0
        %vm1032 = vcmp.ne.s32.totalorder %v1000, 0
        %vm1033 = vcmp.ne.s32.totalorder %v1001, 0
        %vm1034 = vcmp.ne.s32.totalorder %v1002, 0
        %vm1035 = vcmp.ne.s32.totalorder %v1003, 0
        %vm1036 = vcmp.ne.s32.totalorder %v1004, 0
        %vm1037 = vcmp.ne.s32.totalorder %v1005, 0
        %vm1038 = vcmp.ne.s32.totalorder %v1006, 0
        %vm1039 = vcmp.ne.s32.totalorder %v1007, 0
        %vm1040 = vcmp.ne.s32.totalorder %v1008, 0
        %vm1041 = vcmp.ne.s32.totalorder %v1009, 0
        %vm1042 = vcmp.ne.s32.totalorder %v1010, 0
        %vm1043 = vcmp.ne.s32.totalorder %v1011, 0
        %vm1044 = vcmp.ne.s32.totalorder %v1012, 0
        %v1045 = vsel %vm1013, %v917, 0.0
        %v1046 = vsel %vm1014, %v918, 0.0
        %v1047 = vsel %vm1015, %v919, 0.0
        %v1048 = vsel %vm1016, %v920, 0.0
        %v1049 = vsel %vm1017, %v921, 0.0
        %v1050 = vsel %vm1018, %v922, 0.0
        %v1051 = vsel %vm1019, %v923, 0.0
        %v1052 = vsel %vm1020, %v924, 0.0
        %v1053 = vsel %vm1021, %v925, 0.0
        %v1054 = vsel %vm1022, %v926, 0.0
        %v1055 = vsel %vm1023, %v927, 0.0
        %v1056 = vsel %vm1024, %v928, 0.0
        %v1057 = vsel %vm1025, %v929, 0.0
        %v1058 = vsel %vm1026, %v930, 0.0
        %v1059 = vsel %vm1027, %v931, 0.0
        %v1060 = vsel %vm1028, %v932, 0.0
        %v1061 = vsel %vm1029, %v933, 0.0
        %v1062 = vsel %vm1030, %v934, 0.0
        %v1063 = vsel %vm1031, %v935, 0.0
        %v1064 = vsel %vm1032, %v936, 0.0
        %v1065 = vsel %vm1033, %v937, 0.0
        %v1066 = vsel %vm1034, %v938, 0.0
        %v1067 = vsel %vm1035, %v939, 0.0
        %v1068 = vsel %vm1036, %v940, 0.0
        %v1069 = vsel %vm1037, %v941, 0.0
        %v1070 = vsel %vm1038, %v942, 0.0
        %v1071 = vsel %vm1039, %v943, 0.0
        %v1072 = vsel %vm1040, %v944, 0.0
        %v1073 = vsel %vm1041, %v945, 0.0
        %v1074 = vsel %vm1042, %v946, 0.0
        %v1075 = vsel %vm1043, %v947, 0.0
        %v1076 = vsel %vm1044, %v948, 0.0
        %v1077 = vlaneseq
        %v1078 = vshrl.u32 %v1077, 7
        %v1079 = vadd.s32 %v1078, 8
        %v1080 = vadd.s32 %v1078, 16
        %v1081 = vadd.s32 %v1078, 24
        %v1082 = vadd.s32 %v1078, 32
        %v1083 = vadd.s32 %v1078, 40
        %v1084 = vadd.s32 %v1078, 48
        %v1085 = vadd.s32 %v1078, 56
        %v1086 = vadd.s32 %v1078, 64
        %v1087 = vadd.s32 %v1078, 72
        %v1088 = vadd.s32 %v1078, 80
        %v1089 = vadd.s32 %v1078, 88
        %v1090 = vadd.s32 %v1078, 96
        %v1091 = vadd.s32 %v1078, 104
        %v1092 = vadd.s32 %v1078, 112
        %v1093 = vadd.s32 %v1078, 120
        %v1094 = vstv %s510
        %v1095 = vadd.s32 %v1094, %v1078
        %v1096 = vadd.s32 %v1094, %v1079
        %v1097 = vadd.s32 %v1094, %v1080
        %v1098 = vadd.s32 %v1094, %v1081
        %v1099 = vadd.s32 %v1094, %v1082
        %v1100 = vadd.s32 %v1094, %v1083
        %v1101 = vadd.s32 %v1094, %v1084
        %v1102 = vadd.s32 %v1094, %v1085
        %v1103 = vadd.s32 %v1094, %v1086
        %v1104 = vadd.s32 %v1094, %v1087
        %v1105 = vadd.s32 %v1094, %v1088
        %v1106 = vadd.s32 %v1094, %v1089
        %v1107 = vadd.s32 %v1094, %v1090
        %v1108 = vadd.s32 %v1094, %v1091
        %v1109 = vadd.s32 %v1094, %v1092
        %v1110 = vadd.s32 %v1094, %v1093
        %vm1111 = vcmp.lt.s32.totalorder %v1095, 300
        %vm1112 = vcmp.lt.s32.totalorder %v1096, 300
        %vm1113 = vcmp.lt.s32.totalorder %v1097, 300
        %vm1114 = vcmp.lt.s32.totalorder %v1098, 300
        %vm1115 = vcmp.lt.s32.totalorder %v1099, 300
        %vm1116 = vcmp.lt.s32.totalorder %v1100, 300
        %vm1117 = vcmp.lt.s32.totalorder %v1101, 300
        %vm1118 = vcmp.lt.s32.totalorder %v1102, 300
        %vm1119 = vcmp.lt.s32.totalorder %v1103, 300
        %vm1120 = vcmp.lt.s32.totalorder %v1104, 300
        %vm1121 = vcmp.lt.s32.totalorder %v1105, 300
        %vm1122 = vcmp.lt.s32.totalorder %v1106, 300
        %vm1123 = vcmp.lt.s32.totalorder %v1107, 300
        %vm1124 = vcmp.lt.s32.totalorder %v1108, 300
        %vm1125 = vcmp.lt.s32.totalorder %v1109, 300
        %vm1126 = vcmp.lt.s32.totalorder %v1110, 300
        %v1127 = vsel %vm1111, %v1045, 0.0
        %v1128 = vsel %vm1111, %v1046, 0.0
        %v1129 = vsel %vm1112, %v1047, 0.0
        %v1130 = vsel %vm1112, %v1048, 0.0
        %v1131 = vsel %vm1113, %v1049, 0.0
        %v1132 = vsel %vm1113, %v1050, 0.0
        %v1133 = vsel %vm1114, %v1051, 0.0
        %v1134 = vsel %vm1114, %v1052, 0.0
        %v1135 = vsel %vm1115, %v1053, 0.0
        %v1136 = vsel %vm1115, %v1054, 0.0
        %v1137 = vsel %vm1116, %v1055, 0.0
        %v1138 = vsel %vm1116, %v1056, 0.0
        %v1139 = vsel %vm1117, %v1057, 0.0
        %v1140 = vsel %vm1117, %v1058, 0.0
        %v1141 = vsel %vm1118, %v1059, 0.0
        %v1142 = vsel %vm1118, %v1060, 0.0
        %v1143 = vsel %vm1119, %v1061, 0.0
        %v1144 = vsel %vm1119, %v1062, 0.0
        %v1145 = vsel %vm1120, %v1063, 0.0
        %v1146 = vsel %vm1120, %v1064, 0.0
        %v1147 = vsel %vm1121, %v1065, 0.0
        %v1148 = vsel %vm1121, %v1066, 0.0
        %v1149 = vsel %vm1122, %v1067, 0.0
        %v1150 = vsel %vm1122, %v1068, 0.0
        %v1151 = vsel %vm1123, %v1069, 0.0
        %v1152 = vsel %vm1123, %v1070, 0.0
        %v1153 = vsel %vm1124, %v1071, 0.0
        %v1154 = vsel %vm1124, %v1072, 0.0
        %v1155 = vsel %vm1125, %v1073, 0.0
        %v1156 = vsel %vm1125, %v1074, 0.0
        %v1157 = vsel %vm1126, %v1075, 0.0
        %v1158 = vsel %vm1126, %v1076, 0.0
        %v1159 = vlaneseq
        %v1160 = vand.u32 %v1159, 127
        %v1161 = vadd.s32 %v1160, 128
        %v1162 = vstv %s528
        %v1163 = vadd.s32 %v1162, %v1160
        %v1164 = vadd.s32 %v1162, %v1161
        %vm1165 = vcmp.lt.s32.totalorder %v1163, 700
        %vm1166 = vcmp.lt.s32.totalorder %v1164, 700
        %v1167 = vsel %vm1165, %v1127, 0.0
        %v1168 = vsel %vm1166, %v1128, 0.0
        %v1169 = vsel %vm1165, %v1129, 0.0
        %v1170 = vsel %vm1166, %v1130, 0.0
        %v1171 = vsel %vm1165, %v1131, 0.0
        %v1172 = vsel %vm1166, %v1132, 0.0
        %v1173 = vsel %vm1165, %v1133, 0.0
        %v1174 = vsel %vm1166, %v1134, 0.0
        %v1175 = vsel %vm1165, %v1135, 0.0
        %v1176 = vsel %vm1166, %v1136, 0.0
        %v1177 = vsel %vm1165, %v1137, 0.0
        %v1178 = vsel %vm1166, %v1138, 0.0
        %v1179 = vsel %vm1165, %v1139, 0.0
        %v1180 = vsel %vm1166, %v1140, 0.0
        %v1181 = vsel %vm1165, %v1141, 0.0
        %v1182 = vsel %vm1166, %v1142, 0.0
        %v1183 = vsel %vm1165, %v1143, 0.0
        %v1184 = vsel %vm1166, %v1144, 0.0
        %v1185 = vsel %vm1165, %v1145, 0.0
        %v1186 = vsel %vm1166, %v1146, 0.0
        %v1187 = vsel %vm1165, %v1147, 0.0
        %v1188 = vsel %vm1166, %v1148, 0.0
        %v1189 = vsel %vm1165, %v1149, 0.0
        %v1190 = vsel %vm1166, %v1150, 0.0
        %v1191 = vsel %vm1165, %v1151, 0.0
        %v1192 = vsel %vm1166, %v1152, 0.0
        %v1193 = vsel %vm1165, %v1153, 0.0
        %v1194 = vsel %vm1166, %v1154, 0.0
        %v1195 = vsel %vm1165, %v1155, 0.0
        %v1196 = vsel %vm1166, %v1156, 0.0
        %v1197 = vsel %vm1165, %v1157, 0.0
        %v1198 = vsel %vm1166, %v1158, 0.0
        %v1199 = vmul.f32 %v1167, %v1167
        %v1200 = vmul.f32 %v1168, %v1168
        %v1201 = vmul.f32 %v1169, %v1169
        %v1202 = vmul.f32 %v1170, %v1170
        %v1203 = vmul.f32 %v1171, %v1171
        %v1204 = vmul.f32 %v1172, %v1172
        %v1205 = vmul.f32 %v1173, %v1173
        %v1206 = vmul.f32 %v1174, %v1174
        %v1207 = vmul.f32 %v1175, %v1175
        %v1208 = vmul.f32 %v1176, %v1176
        %v1209 = vmul.f32 %v1177, %v1177
        %v1210 = vmul.f32 %v1178, %v1178
        %v1211 = vmul.f32 %v1179, %v1179
        %v1212 = vmul.f32 %v1180, %v1180
        %v1213 = vmul.f32 %v1181, %v1181
        %v1214 = vmul.f32 %v1182, %v1182
        %v1215 = vmul.f32 %v1183, %v1183
        %v1216 = vmul.f32 %v1184, %v1184
        %v1217 = vmul.f32 %v1185, %v1185
        %v1218 = vmul.f32 %v1186, %v1186
        %v1219 = vmul.f32 %v1187, %v1187
        %v1220 = vmul.f32 %v1188, %v1188
        %v1221 = vmul.f32 %v1189, %v1189
        %v1222 = vmul.f32 %v1190, %v1190
        %v1223 = vmul.f32 %v1191, %v1191
        %v1224 = vmul.f32 %v1192, %v1192
        %v1225 = vmul.f32 %v1193, %v1193
        %v1226 = vmul.f32 %v1194, %v1194
        %v1227 = vmul.f32 %v1195, %v1195
        %v1228 = vmul.f32 %v1196, %v1196
        %v1229 = vmul.f32 %v1197, %v1197
        %v1230 = vmul.f32 %v1198, %v1198
        %v1231 = vadd.f32 %v1199, %v1200
        %v1232 = vadd.f32 %v1231, %v1201
        %v1233 = vadd.f32 %v1232, %v1202
        %v1234 = vadd.f32 %v1233, %v1203
        %v1235 = vadd.f32 %v1234, %v1204
        %v1236 = vadd.f32 %v1235, %v1205
        %v1237 = vadd.f32 %v1236, %v1206
        %v1238 = vadd.f32 %v1237, %v1207
        %v1239 = vadd.f32 %v1238, %v1208
        %v1240 = vadd.f32 %v1239, %v1209
        %v1241 = vadd.f32 %v1240, %v1210
        %v1242 = vadd.f32 %v1241, %v1211
        %v1243 = vadd.f32 %v1242, %v1212
        %v1244 = vadd.f32 %v1243, %v1213
        %v1245 = vadd.f32 %v1244, %v1214
        %v1246 = vadd.f32 %v1245, %v1215
        %v1247 = vadd.f32 %v1246, %v1216
        %v1248 = vadd.f32 %v1247, %v1217
        %v1249 = vadd.f32 %v1248, %v1218
        %v1250 = vadd.f32 %v1249, %v1219
        %v1251 = vadd.f32 %v1250, %v1220
        %v1252 = vadd.f32 %v1251, %v1221
        %v1253 = vadd.f32 %v1252, %v1222
        %v1254 = vadd.f32 %v1253, %v1223
        %v1255 = vadd.f32 %v1254, %v1224
        %v1256 = vadd.f32 %v1255, %v1225
        %v1257 = vadd.f32 %v1256, %v1226
        %v1258 = vadd.f32 %v1257, %v1227
        %v1259 = vadd.f32 %v1258, %v1228
        %v1260 = vadd.f32 %v1259, %v1229
        %v1261 = vadd.f32 %v1260, %v1230
        %1262 = vadd.xlane.f32.xlu0 %v1261
        %v1263 = vpop.xlane.xlu0 %1262
        %v1264 = vrot.slane %v1263, 4
        %v1265 = vadd.f32 %v1263, %v1264
        %v1266 = vrot.slane %v1265, 2
        %v1267 = vadd.f32 %v1265, %v1266
        %v1268 = vrot.slane %v1267, 1
        %v1269 = vadd.f32 %v1267, %v1268
        %s1270 = vtos %v1269
        %v1271 = vstv %s1270
        %vm1272 = vcmask 0
        %1273 = vst.msk [vmem:[%s507] sm:$0x1] %vm1272, %v1271
        %s1274 = sand.u32 %s143, 1
        %s1275 = scalar_lea.sflag [#allocation4], %s1274
        %s1276 = sand.u32 %s143, 1
        %s1277 = smul.addr %s1276, 256
        %s1278 = scalar_lea.vmem [#allocation6], %s1277
        %p1279 = scmp.lt.s32.totalorder %s27, 2
        %s1280 = scalar_select %p1279, %s27, 2
        %p1281 = scmp.lt.s32.totalorder %s28, 2
        %s1282 = scalar_select %p1281, %s28, 2
        %s1283 = smul.addr %s1280, 3
        %s1284 = sadd.s32 %s1282, %s1283
        %s1285 = scalar_lea.vmem %s5, %s1284
        // Predicated region
        $region89: #{tpu_custom_call.1} parent=79 // pred_check
          %p1286 = pneg %p153
        $region90: #{tpu_custom_call.1} parent=79 // pred_check_branch
          %1288 = sbr.rel (%p1286) target = $region92
        $region91: #{tpu_custom_call.1} parent=79 // pred_region
          %s1289 = smul.u32 16, %s27
          %s1290 = smul.u32 2, %s28
          %s1291 = ssub.s32 38, %s1289
          %p1292 = scmp.lt.s32.totalorder %s1291, 16
          %s1293 = scalar_select %p1292, %s1291, 16
          %s1294 = smul.u32 8, %s1293
          %s1295 = smul.u32 %s1294, 2
          %s1296 = ssub.s32 256, %s1295
          %s1297 = sshll.u32 %s1296, 4
          %1298 = vsyncadd %s1275, %s1297
          %p1299 = scmp.ne.s32.totalorder 0, %s1295
          %s1300 = smul.addr %s1289, 6
          %s1301 = sadd.s32 %s1290, %s1300
          %s1302 = smul.addr %s1301, 8
          %s1303 = scalar_lea.hbm %s4, %s1302
          %s1304 = smul.u32 16, %s1293
          %s1305 = sshll.u32 %s1278, 4
          %s1306 = int_to_ptr.vmem [resolvable:$true] %s1305
          %s1307 = sshll.u32 %s1303, 4
          %s1308 = int_to_ptr.hbm [resolvable:$true] %s1307
          %s1309 = sshll.u32 %s1304, 4
          %1313 = dma.vmem_to_hbm [thread:$0]  (%p1299), %s1306, %s1309, %s1308, %s1275, 256, 768, 16
        $region92: #{tpu_custom_call.1} parent=79 // pred_fallthru
          _
        // Predicated region
        $region93: #{tpu_custom_call.1} parent=79 // pred_check
          %p1314 = pneg %p181
        $region94: #{tpu_custom_call.1} parent=79 // pred_check_branch
          %1316 = sbr.rel (%p1314) target = $region96
        $region95: #{tpu_custom_call.1} parent=79 // pred_region
          _
        $region96: #{tpu_custom_call.1} parent=79 // pred_fallthru
          _
      $region80: #{tpu_custom_call.1} parent=5 // pred_fallthru
        _
      %p1317 = scmp.le.s32.totalorder 2, %s18
      // Predicated region
      $region97: #{tpu_custom_call.1} parent=5 // pred_check
        %p1318 = pneg %p1317
      $region98: #{tpu_custom_call.1} parent=5 // pred_check_branch
        %1320 = sbr.rel (%p1318) target = $region100
      $region99: #{tpu_custom_call.1} parent=5 // pred_region
        %s1321 = ssub.s32 %s18, 2
        // Predicated region
        $region101: #{tpu_custom_call.1} parent=99 // pred_check
          %p1322 = pneg %p159
        $region102: #{tpu_custom_call.1} parent=99 // pred_check_branch
          %1324 = sbr.rel (%p1322) target = $region104
        $region103: #{tpu_custom_call.1} parent=99 // pred_region
          %s1325 = sand.u32 %s144, 1
          %s1326 = scalar_lea.sflag [#allocation4], %s1325
          %s1327 = sand.u32 %s144, 1
          %s1328 = smul.addr %s1327, 256
          %s1329 = scalar_lea.vmem [#allocation6], %s1328
          %1331 = dma.done %s1326, 4096
        $region104: #{tpu_custom_call.1} parent=99 // pred_fallthru
          _
        // Predicated region
        $region105: #{tpu_custom_call.1} parent=99 // pred_check
          %p1332 = pneg %p187
        $region106: #{tpu_custom_call.1} parent=99 // pred_check_branch
          %1334 = sbr.rel (%p1332) target = $region108
        $region107: #{tpu_custom_call.1} parent=99 // pred_region
          %p1335 = scmp.lt.s32.totalorder %s29, 2
          %s1336 = scalar_select %p1335, %s29, 2
          %p1337 = scmp.lt.s32.totalorder %s30, 2
          %s1338 = scalar_select %p1337, %s30, 2
          %s1339 = smul.addr %s1336, 3
          %s1340 = sadd.s32 %s1338, %s1339
          %s1341 = scalar_lea.vmem %s5, %s1340
        $region108: #{tpu_custom_call.1} parent=99 // pred_fallthru
          _
      $region100: #{tpu_custom_call.1} parent=5 // pred_fallthru
        _
    $region6: #{tpu_custom_call.1} parent=1 // loop_footer
      %s22 = sadd.s32 1, %s18
    $region7: #{tpu_custom_call.1} parent=1 // loop_footer_branch
      %17 = sbr.rel target = $region3
    $region8: #{tpu_custom_call.1} parent=1 // loop_exit
      _
    %1342 = vsyncpa [#allocation3], 1
    %s1343 = scalar_lea.sflag [#allocation3], 1
    %1344 = vsyncpa %s1343, 1
    %1345 = vsyncpa [#allocation4], 1
    %s1346 = scalar_lea.sflag [#allocation4], 1
    %1347 = vsyncpa %s1346, 1

</llo_original>
